<compile_context>
chip_gen: v7x
topology: tpu7x:2x2x1
jax: 0.10.0
libtpu: 0.0.40
codegen_flags: <defaults>
</compile_context>

<pallas_src>
import numpy as np

import jax
import jax.numpy as jnp
from jax.experimental import pallas as pl
from jax.experimental.pallas import tpu as pltpu

# ---------------------------------------------------------------------------
# Problem geometry implied by fc(1024 -> 1): 4x4x3 input, batch 2.
# ---------------------------------------------------------------------------
B = 2                       # batch
IN_H = IN_W = 4             # input spatial
IN_C = 3                    # input channels
F_IN = IN_H * IN_W * IN_C   # 48 flat HWC features per sample
OH = OW = 2                 # spatial after the stride-2 conv (kept by conv2/3)
P = OH * OW                 # output positions per sample
M = B * P                   # activation rows in-kernel: row m = b*P + p
C1, C1P = 96, 128           # conv1 channels, padded to lane-dense 128
C2 = 256
C3 = 256
K2 = 9 * C1P                # 1152 : conv2 im2col K
K3 = 9 * C2                 # 2304 : conv3 im2col K
EPS = 1e-5
NEG_SLOPE = 0.2


# ---------------------------------------------------------------------------
# Single fused kernel.
# ---------------------------------------------------------------------------
def descriptor4_kernel(xb_ref, w1_ref, g1_ref, b1_ref,
                       w2_hbm, g2_ref, b2_ref,
                       w3_hbm, g3_ref, b3_ref,
                       wfc_ref, bfc_ref,
                       o_ref,
                       w2_vmem, w3_vmem, x1d_ref, x2d_ref, sem):
    f32 = jnp.float32

    # Kick off the conv2/conv3 weight DMAs immediately so they overlap with
    # the layer-1 / layer-2 compute instead of completing before the body.
    cp2 = pltpu.make_async_copy(w2_hbm, w2_vmem, sem.at[0])
    cp3 = pltpu.make_async_copy(w3_hbm, w3_vmem, sem.at[1])
    cp2.start()
    cp3.start()

    def bn_lrelu(y, gamma, beta):
        # Training-mode BatchNorm (batch statistics, biased variance),
        # two-pass for precision, folded into one FMA, then LeakyReLU(0.2).
        mean = jnp.mean(y, axis=0, keepdims=True)
        d = y - mean
        var = jnp.mean(d * d, axis=0, keepdims=True)
        z = d * (gamma * jax.lax.rsqrt(var + EPS)) + beta
        return jnp.where(z >= 0, z, NEG_SLOPE * z)

    # Row-position predicates for the 3x3 boundary masks (iota-generated,
    # no constant operands).  Row m = b*P + p with p = ph*OW + pw.
    row = jax.lax.broadcasted_iota(jnp.int32, (M, 1), 0)
    pos = jnp.bitwise_and(row, P - 1)          # p in [0, 4)
    ph0 = pos < OW                             # output ph == 0
    ph1 = pos >= OW                            # output ph == 1
    pwb = jnp.bitwise_and(pos, 1)
    pw0 = pwb == 0                             # output pw == 0
    pw1 = pwb == 1                             # output pw == 1

    def im2col_3x3(x, xdbl_ref):
        # 3x3 / pad-1 im2col on the 2x2 grid.  Each tap t=(di,dj) is a
        # circular sublane shift by (di-1)*OW+(dj-1): realized as an offset
        # read of 8 rows from a doubled, fully-initialized VMEM copy of x
        # (so every read is in-bounds) plus a per-row validity mask.  The 9
        # slabs are lane-concatenated and cast to bf16 once, turning the whole
        # conv into a single long-K MXU matmul (no MXU shift/accum chain).
        xdbl_ref[pl.ds(0, M), :] = x
        xdbl_ref[pl.ds(M, M), :] = x
        slabs = []
        for t in range(9):
            di, dj = divmod(t, 3)
            k = ((di - 1) * OW + (dj - 1)) % M
            sh = x if k == 0 else xdbl_ref[pl.ds(k, M), :]
            conds = []
            if di == 0:
                conds.append(ph1)              # needs ph-1 >= 0
            elif di == 2:
                conds.append(ph0)              # needs ph+1 <= 1
            if dj == 0:
                conds.append(pw1)
            elif dj == 2:
                conds.append(pw0)
            if conds:
                valid = conds[0]
                for c in conds[1:]:
                    valid = jnp.logical_and(valid, c)
                sh = jnp.where(valid, sh, 0.0)
            slabs.append(sh)
        return jnp.concatenate(slabs, axis=1).astype(jnp.bfloat16)

    # ---- layer 1: Conv(3->96, k=5, s=2, p=2) as ONE (M,192)@(192,128) matmul
    y1 = jnp.dot(xb_ref[...], w1_ref[...], preferred_element_type=f32)
    x1 = bn_lrelu(y1, g1_ref[...], b1_ref[...])

    # ---- layer 2: Conv(96->256, 3,1,1) as ONE (M,1152)@(1152,256) matmul
    a2 = im2col_3x3(x1, x1d_ref)           # build im2col before waiting on DMA
    cp2.wait()
    y2 = jnp.dot(a2, w2_vmem[...], preferred_element_type=f32)
    x2 = bn_lrelu(y2, g2_ref[...], b2_ref[...])

    # ---- layer 3: Conv(256->256, 3,1,1) as ONE (M,2304)@(2304,256) matmul
    a3 = im2col_3x3(x2, x2d_ref)
    cp3.wait()
    y3 = jnp.dot(a3, w3_vmem[...], preferred_element_type=f32)
    x3 = bn_lrelu(y3, g3_ref[...], b3_ref[...])

    # ---- flatten(NCHW) folded into wfc + fc; per-sample sum via iota selector
    prod = x3 * wfc_ref[...]                                     # (M, C3)
    col = jax.lax.broadcasted_iota(jnp.int32, (B, M), 1)
    brow = jax.lax.broadcasted_iota(jnp.int32, (B, M), 0)
    lo = brow * P
    bsel = jnp.logical_and(col >= lo, col < lo + P).astype(f32)  # (B, M)
    per_b = jnp.dot(bsel, prod, preferred_element_type=f32)      # (B, C3)
    o_ref[...] = jnp.sum(per_b, axis=1, keepdims=True) + bfc_ref[...]


# ---------------------------------------------------------------------------
# pallas_call wrapper.
# ---------------------------------------------------------------------------
def _vmem_spec(shape):
    nd = len(shape)
    return pl.BlockSpec(shape, lambda i, nd=nd: (0,) * nd)


def fused_forward_call(xblock, pk):
    args = (xblock, pk["w1"], pk["g1"], pk["b1"],
            pk["w2"], pk["g2"], pk["b2"],
            pk["w3"], pk["g3"], pk["b3"],
            pk["wfc"], pk["bfc"])
    in_specs = [
        _vmem_spec(xblock.shape),
        _vmem_spec(pk["w1"].shape),
        _vmem_spec(pk["g1"].shape),
        _vmem_spec(pk["b1"].shape),
        pl.BlockSpec(memory_space=pl.ANY),     # w2: stays in HBM, manual DMA
        _vmem_spec(pk["g2"].shape),
        _vmem_spec(pk["b2"].shape),
        pl.BlockSpec(memory_space=pl.ANY),     # w3: stays in HBM, manual DMA
        _vmem_spec(pk["g3"].shape),
        _vmem_spec(pk["b3"].shape),
        _vmem_spec(pk["wfc"].shape),
        _vmem_spec(pk["bfc"].shape),
    ]
    return pl.pallas_call(
        descriptor4_kernel,
        out_shape=jax.ShapeDtypeStruct((B, 1), jnp.float32),
        grid=(1,),
        in_specs=in_specs,
        out_specs=_vmem_spec((B, 1)),
        scratch_shapes=[
            pltpu.VMEM((K2, C2), jnp.bfloat16),    # conv2 weights (DMA target)
            pltpu.VMEM((K3, C3), jnp.bfloat16),    # conv3 weights (DMA target)
            pltpu.VMEM((2 * M, C1P), jnp.float32), # doubled x1 for shifted reads
            pltpu.VMEM((2 * M, C2), jnp.float32),  # doubled x2 for shifted reads
            pltpu.SemaphoreType.DMA((2,)),
        ],
        compiler_params=pltpu.CompilerParams(
            dimension_semantics=("arbitrary",)),
    )(*args)


@jax.jit
def descriptor4_forward(x_nchw, pk):
    # Host-side prep (the only non-kernel work): NCHW -> per-sample HWC rows,
    # then the block layout for the fused conv1 matmul: row m = b*P + p holds
    # sample b's 48 features in columns p*48:(p+1)*48, zeros elsewhere.
    xf = jnp.transpose(x_nchw, (0, 2, 3, 1)).reshape(B, F_IN)          # (B, 48)
    eye = jnp.eye(P, dtype=xf.dtype)                                   # (P, P)
    xblock = (eye[None, :, :, None] * xf[:, None, None, :]).reshape(M, P * F_IN)
    return fused_forward_call(xblock, pk)


# ---------------------------------------------------------------------------
# Parameter construction: raw PyTorch-layout params + packed kernel operands.
# ---------------------------------------------------------------------------
def init_params(key):
    ks = jax.random.split(key, 5)
    raw = {
        "w1": 0.05 * jax.random.normal(ks[0], (C1, IN_C, 5, 5), jnp.float32),  # OIHW
        "w2": 0.05 * jax.random.normal(ks[1], (C2, C1, 3, 3), jnp.float32),
        "w3": 0.05 * jax.random.normal(ks[2], (C3, C2, 3, 3), jnp.float32),
        "wfc": 0.05 * jax.random.normal(ks[3], (1, C3 * P), jnp.float32),       # (out, in)
        "bfc": 0.05 * jax.random.normal(ks[4], (1,), jnp.float32),
        "g1": jnp.ones((C1,), jnp.float32), "b1": jnp.zeros((C1,), jnp.float32),
        "g2": jnp.ones((C2,), jnp.float32), "b2": jnp.zeros((C2,), jnp.float32),
        "g3": jnp.ones((C3,), jnp.float32), "b3": jnp.zeros((C3,), jnp.float32),
        # NOTE: conv biases are not materialized — with training-mode BatchNorm
        # (batch statistics) a per-channel bias before BN is exactly cancelled.
    }
    return raw, pack_params(raw)


def pack_params(raw):
    w1 = np.asarray(raw["w1"], np.float32)
    w2 = np.asarray(raw["w2"], np.float32)
    w3 = np.asarray(raw["w3"], np.float32)
    wfc = np.asarray(raw["wfc"], np.float32)
    bfc = np.asarray(raw["bfc"], np.float32)

    # conv1: per-output-position dense maps, stacked into one (P*48, C1P) weight
    # so the whole layer is a single matmul against the host-built block layout.
    w1big = np.zeros((P * F_IN, C1P), np.float32)
    for pos in range(P):
        ph, pw = divmod(pos, OW)
        for di in range(5):
            for dj in range(5):
                ih = 2 * ph + di - 2
                iw = 2 * pw + dj - 2
                if 0 <= ih < IN_H and 0 <= iw < IN_W:
                    for ci in range(IN_C):
                        w1big[pos * F_IN + (ih * IN_W + iw) * IN_C + ci, :C1] = \
                            w1[:, ci, di, dj]

    # conv2/conv3: per-tap weights stacked along K (tap order t = di*3+dj must
    # match the in-kernel lane-concat order).  conv2 Cin padded 96 -> 128 with
    # zero rows, so the padded x1 channels are inert.
    w2big = np.zeros((K2, C2), np.float32)
    w3big = np.zeros((K3, C3), np.float32)
    for t in range(9):
        di, dj = divmod(t, 3)
        w2big[t * C1P: t * C1P + C1, :] = w2[:, :, di, dj].T
        w3big[t * C2: (t + 1) * C2, :] = w3[:, :, di, dj].T

    # fc weight: fold the NCHW-flatten permutation (index = c*P + pos), tiled
    # over the batch so it lines up with the (M, C3) activation row layout.
    wfc_pos = wfc.reshape(C3, P).T                 # (P, C3): [pos, c]
    wfc_t = np.tile(wfc_pos, (B, 1))               # (M, C3): row b*P+pos

    def pad_c(v, cp):
        out = np.zeros((1, cp), np.float32)
        out[0, :v.shape[0]] = np.asarray(v, np.float32)
        return out

    return {
        "w1": jnp.asarray(w1big),                          # f32, tiny
        "g1": jnp.asarray(pad_c(raw["g1"], C1P)),          # padded: gamma=0, beta=0
        "b1": jnp.asarray(pad_c(raw["b1"], C1P)),
        "w2": jnp.asarray(w2big, dtype=jnp.bfloat16),      # bf16, f32 MXU accumulate
        "g2": jnp.asarray(pad_c(raw["g2"], C2)),
        "b2": jnp.asarray(pad_c(raw["b2"], C2)),
        "w3": jnp.asarray(w3big, dtype=jnp.bfloat16),
        "g3": jnp.asarray(pad_c(raw["g3"], C3)),
        "b3": jnp.asarray(pad_c(raw["b3"], C3)),
        "wfc": jnp.asarray(wfc_t),
        "bfc": jnp.asarray(bfc.reshape(1, 1)),
    }


# ---------------------------------------------------------------------------
# Pure-JAX reference (matches the PyTorch module with batch-stat BN); the
# tolerance accounts for the bf16 conv2/conv3 weights + activations.
# ---------------------------------------------------------------------------
def reference_forward(x, p):
    def conv(h, w, stride, pad):
        return jax.lax.conv_general_dilated(
            h, w, window_strides=(stride, stride),
            padding=((pad, pad), (pad, pad)),
            dimension_numbers=("NCHW", "OIHW", "NCHW"))

    def bn_lrelu(y, gamma, beta):
        mean = jnp.mean(y, axis=(0, 2, 3), keepdims=True)
        var = jnp.mean((y - mean) ** 2, axis=(0, 2, 3), keepdims=True)
        z = (gamma.reshape(1, -1, 1, 1) * (y - mean) * jax.lax.rsqrt(var + EPS)
             + beta.reshape(1, -1, 1, 1))
        return jnp.where(z >= 0, z, NEG_SLOPE * z)

    h = bn_lrelu(conv(x, p["w1"], 2, 2), p["g1"], p["b1"])
    h = bn_lrelu(conv(h, p["w2"], 1, 1), p["g2"], p["b2"])
    h = bn_lrelu(conv(h, p["w3"], 1, 1), p["g3"], p["b3"])
    flat = h.reshape(h.shape[0], -1)               # NCHW flatten, like torch.reshape
    return flat @ p["wfc"].T + p["bfc"]


if __name__ == "__main__":
    key = jax.random.PRNGKey(0)
    k_x, k_p = jax.random.split(key)
    # Input implied by fc(1024): 4x4 spatial, 3 channels, batch=2 (NCHW).
    x = jax.random.normal(k_x, (B, IN_C, IN_H, IN_W), jnp.float32)
    raw_params, packed_params = init_params(k_p)

    out = descriptor4_forward(x, packed_params)
    jax.block_until_ready(out)
    assert out.shape == (B, 1), out.shape

    ref = reference_forward(x, raw_params)
    err = float(jnp.max(jnp.abs(out - ref)))
    assert err < 5e-2, f"mismatch vs reference: {err}"

    print("KERNEL_OK")
</pallas_src>

<mosaic_0001>
module attributes {stable_mosaic.version = 11 : i64} {
  func.func @descriptor4_kernel(%arg0: i32, %arg1: memref<8x192xf32, #tpu.memory_space<vmem>>, %arg2: memref<192x128xf32, #tpu.memory_space<vmem>>, %arg3: memref<1x128xf32, #tpu.memory_space<vmem>>, %arg4: memref<1x128xf32, #tpu.memory_space<vmem>>, %arg5: memref<1152x256xbf16, #tpu.memory_space<any>>, %arg6: memref<1x256xf32, #tpu.memory_space<vmem>>, %arg7: memref<1x256xf32, #tpu.memory_space<vmem>>, %arg8: memref<2304x256xbf16, #tpu.memory_space<any>>, %arg9: memref<1x256xf32, #tpu.memory_space<vmem>>, %arg10: memref<1x256xf32, #tpu.memory_space<vmem>>, %arg11: memref<8x256xf32, #tpu.memory_space<vmem>>, %arg12: memref<1x1xf32, #tpu.memory_space<vmem>>, %arg13: memref<2x1xf32, #tpu.memory_space<vmem>>, %arg14: memref<1152x256xbf16, #tpu.memory_space<vmem>>, %arg15: memref<2304x256xbf16, #tpu.memory_space<vmem>>, %arg16: memref<16x128xf32, #tpu.memory_space<vmem>>, %arg17: memref<16x256xf32, #tpu.memory_space<vmem>>, %arg18: memref<2x!tpu.dma_semaphore, #tpu.memory_space<semaphore_mem>>) attributes {dimension_semantics = [#tpu.dimension_semantics<arbitrary>], iteration_bounds = array<i64: 1>, scalar_prefetch = 0 : i64, scratch_operands = 5 : i64, tpu.core_type = #tpu.core_type<tc>, window_params = [{pipeline_mode = #tpu.pipeline_mode<synchronous>, transform_indices = @transform_0, window_bounds = array<i64: 8, 192>}, {pipeline_mode = #tpu.pipeline_mode<synchronous>, transform_indices = @transform_1, window_bounds = array<i64: 192, 128>}, {pipeline_mode = #tpu.pipeline_mode<synchronous>, transform_indices = @transform_2, window_bounds = array<i64: 1, 128>}, {pipeline_mode = #tpu.pipeline_mode<synchronous>, transform_indices = @transform_3, window_bounds = array<i64: 1, 128>}, {}, {pipeline_mode = #tpu.pipeline_mode<synchronous>, transform_indices = @transform_5, window_bounds = array<i64: 1, 256>}, {pipeline_mode = #tpu.pipeline_mode<synchronous>, transform_indices = @transform_6, window_bounds = array<i64: 1, 256>}, {}, {pipeline_mode = #tpu.pipeline_mode<synchronous>, transform_indices = @transform_8, window_bounds = array<i64: 1, 256>}, {pipeline_mode = #tpu.pipeline_mode<synchronous>, transform_indices = @transform_9, window_bounds = array<i64: 1, 256>}, {pipeline_mode = #tpu.pipeline_mode<synchronous>, transform_indices = @transform_10, window_bounds = array<i64: 8, 256>}, {pipeline_mode = #tpu.pipeline_mode<synchronous>, transform_indices = @transform_11, window_bounds = array<i64: 1, 1>}, {pipeline_mode = #tpu.pipeline_mode<synchronous>, transform_indices = @transform_12, window_bounds = array<i64: 2, 1>}]} {
    %c0_i32 = arith.constant 0 : i32
    %0 = tpu.memref_slice %arg18[%c0_i32] : memref<2x!tpu.dma_semaphore, #tpu.memory_space<semaphore_mem>> -> memref<1x!tpu.dma_semaphore, #tpu.memory_space<semaphore_mem>>
    %1 = tpu.memref_squeeze %0 : memref<1x!tpu.dma_semaphore, #tpu.memory_space<semaphore_mem>> -> memref<!tpu.dma_semaphore, #tpu.memory_space<semaphore_mem>>
    tpu.enqueue_dma source(%arg5 : memref<1152x256xbf16, #tpu.memory_space<any>>) target(%arg14 : memref<1152x256xbf16, #tpu.memory_space<vmem>>) target_semaphore(%1 : memref<!tpu.dma_semaphore, #tpu.memory_space<semaphore_mem>>)
    %c1_i32 = arith.constant 1 : i32
    %2 = tpu.memref_slice %arg18[%c1_i32] : memref<2x!tpu.dma_semaphore, #tpu.memory_space<semaphore_mem>> -> memref<1x!tpu.dma_semaphore, #tpu.memory_space<semaphore_mem>>
    %3 = tpu.memref_squeeze %2 : memref<1x!tpu.dma_semaphore, #tpu.memory_space<semaphore_mem>> -> memref<!tpu.dma_semaphore, #tpu.memory_space<semaphore_mem>>
    tpu.enqueue_dma source(%arg8 : memref<2304x256xbf16, #tpu.memory_space<any>>) target(%arg15 : memref<2304x256xbf16, #tpu.memory_space<vmem>>) target_semaphore(%3 : memref<!tpu.dma_semaphore, #tpu.memory_space<semaphore_mem>>)
    %4 = tpu.iota {dimensions = array<i32: 0>} : vector<8x1xi32>
    %c3_i32 = arith.constant 3 : i32
    %5 = vector.broadcast %c3_i32 : i32 to vector<8x1xi32>
    %6 = arith.andi %4, %5 : vector<8x1xi32>
    %c2_i32 = arith.constant 2 : i32
    %7 = vector.broadcast %c2_i32 : i32 to vector<8x1xi32>
    %8 = arith.cmpi slt, %6, %7 : vector<8x1xi32>
    %c2_i32_0 = arith.constant 2 : i32
    %9 = vector.broadcast %c2_i32_0 : i32 to vector<8x1xi32>
    %10 = arith.cmpi sge, %6, %9 : vector<8x1xi32>
    %c1_i32_1 = arith.constant 1 : i32
    %11 = vector.broadcast %c1_i32_1 : i32 to vector<8x1xi32>
    %12 = arith.andi %6, %11 : vector<8x1xi32>
    %c0_i32_2 = arith.constant 0 : i32
    %13 = vector.broadcast %c0_i32_2 : i32 to vector<8x1xi32>
    %14 = arith.cmpi eq, %12, %13 : vector<8x1xi32>
    %c1_i32_3 = arith.constant 1 : i32
    %15 = vector.broadcast %c1_i32_3 : i32 to vector<8x1xi32>
    %16 = arith.cmpi eq, %12, %15 : vector<8x1xi32>
    %c0 = arith.constant 0 : index
    %c0_4 = arith.constant 0 : index
    %17 = vector.load %arg1[%c0, %c0_4] : memref<8x192xf32, #tpu.memory_space<vmem>>, vector<8x192xf32>
    %c0_5 = arith.constant 0 : index
    %c0_6 = arith.constant 0 : index
    %18 = vector.load %arg2[%c0_5, %c0_6] : memref<192x128xf32, #tpu.memory_space<vmem>>, vector<192x128xf32>
    %cst = arith.constant dense<0.000000e+00> : vector<8x128xf32>
    %19 = tpu.matmul %17, %18, %cst {dimension_numbers = #tpu.dot_dimension_numbers<[1], [0], [0], [1], [0, 0, 1, 1], [], []>} : vector<8x192xf32>, vector<192x128xf32>, vector<8x128xf32> -> vector<8x128xf32>
    %c0_7 = arith.constant 0 : index
    %c0_8 = arith.constant 0 : index
    %20 = vector.load %arg3[%c0_7, %c0_8] : memref<1x128xf32, #tpu.memory_space<vmem>>, vector<1x128xf32>
    %c0_9 = arith.constant 0 : index
    %c0_10 = arith.constant 0 : index
    %21 = vector.load %arg4[%c0_9, %c0_10] : memref<1x128xf32, #tpu.memory_space<vmem>>, vector<1x128xf32>
    %cst_11 = arith.constant dense<0.000000e+00> : vector<128xf32>
    %22 = vector.multi_reduction <add>, %19, %cst_11 [0] : vector<8x128xf32> to vector<128xf32>
    %23 = vector.shape_cast %22 : vector<128xf32> to vector<1x128xf32>
    %cst_12 = arith.constant 8.000000e+00 : f32
    %24 = vector.broadcast %cst_12 : f32 to vector<1x128xf32>
    %25 = arith.divf %23, %24 : vector<1x128xf32>
    %26 = vector.broadcast %25 : vector<1x128xf32> to vector<8x128xf32>
    %27 = arith.subf %19, %26 : vector<8x128xf32>
    %28 = arith.mulf %27, %27 : vector<8x128xf32>
    %cst_13 = arith.constant dense<0.000000e+00> : vector<128xf32>
    %29 = vector.multi_reduction <add>, %28, %cst_13 [0] : vector<8x128xf32> to vector<128xf32>
    %30 = vector.shape_cast %29 : vector<128xf32> to vector<1x128xf32>
    %cst_14 = arith.constant 8.000000e+00 : f32
    %31 = vector.broadcast %cst_14 : f32 to vector<1x128xf32>
    %32 = arith.divf %30, %31 : vector<1x128xf32>
    %cst_15 = arith.constant 9.99999974E-6 : f32
    %33 = vector.broadcast %cst_15 : f32 to vector<1x128xf32>
    %34 = arith.addf %32, %33 : vector<1x128xf32>
    %35 = math.rsqrt %34 : vector<1x128xf32>
    %36 = arith.mulf %20, %35 : vector<1x128xf32>
    %37 = vector.broadcast %36 : vector<1x128xf32> to vector<8x128xf32>
    %38 = arith.mulf %27, %37 : vector<8x128xf32>
    %39 = vector.broadcast %21 : vector<1x128xf32> to vector<8x128xf32>
    %40 = arith.addf %38, %39 : vector<8x128xf32>
    %cst_16 = arith.constant 0.000000e+00 : f32
    %41 = vector.broadcast %cst_16 : f32 to vector<8x128xf32>
    %42 = arith.cmpf oge, %40, %41 : vector<8x128xf32>
    %cst_17 = arith.constant 2.000000e-01 : f32
    %43 = vector.broadcast %cst_17 : f32 to vector<8x128xf32>
    %44 = arith.mulf %43, %40 : vector<8x128xf32>
    %45 = arith.select %42, %40, %44 : vector<8x128xi1>, vector<8x128xf32>
    %c0_18 = arith.constant 0 : index
    %c0_19 = arith.constant 0 : index
    %46 = vector.load %arg16[%c0_18, %c0_19] : memref<16x128xf32, #tpu.memory_space<vmem>>, vector<8x128xf32>
    tpu.vector_store %arg16[%c0_18, %c0_19], %45 {strides = array<i32>} : memref<16x128xf32, #tpu.memory_space<vmem>>, vector<8x128xf32>,
    %c8 = arith.constant 8 : index
    %c0_20 = arith.constant 0 : index
    %47 = vector.load %arg16[%c8, %c0_20] : memref<16x128xf32, #tpu.memory_space<vmem>>, vector<8x128xf32>
    tpu.vector_store %arg16[%c8, %c0_20], %45 {strides = array<i32>} : memref<16x128xf32, #tpu.memory_space<vmem>>, vector<8x128xf32>,
    %c5 = arith.constant 5 : index
    %c0_21 = arith.constant 0 : index
    %48 = vector.load %arg16[%c5, %c0_21] : memref<16x128xf32, #tpu.memory_space<vmem>>, vector<8x128xf32>
    %49 = arith.andi %10, %16 : vector<8x1xi1>
    %cst_22 = arith.constant 0.000000e+00 : f32
    %50 = vector.shape_cast %49 : vector<8x1xi1> to vector<8x1xi1>
    %51 = vector.broadcast %50 : vector<8x1xi1> to vector<8x128xi1>
    %52 = vector.broadcast %cst_22 : f32 to vector<8x128xf32>
    %53 = arith.select %51, %48, %52 : vector<8x128xi1>, vector<8x128xf32>
    %c6 = arith.constant 6 : index
    %c0_23 = arith.constant 0 : index
    %54 = vector.load %arg16[%c6, %c0_23] : memref<16x128xf32, #tpu.memory_space<vmem>>, vector<8x128xf32>
    %cst_24 = arith.constant 0.000000e+00 : f32
    %55 = vector.shape_cast %10 : vector<8x1xi1> to vector<8x1xi1>
    %56 = vector.broadcast %55 : vector<8x1xi1> to vector<8x128xi1>
    %57 = vector.broadcast %cst_24 : f32 to vector<8x128xf32>
    %58 = arith.select %56, %54, %57 : vector<8x128xi1>, vector<8x128xf32>
    %c7 = arith.constant 7 : index
    %c0_25 = arith.constant 0 : index
    %59 = vector.load %arg16[%c7, %c0_25] : memref<16x128xf32, #tpu.memory_space<vmem>>, vector<8x128xf32>
    %60 = arith.andi %10, %14 : vector<8x1xi1>
    %cst_26 = arith.constant 0.000000e+00 : f32
    %61 = vector.shape_cast %60 : vector<8x1xi1> to vector<8x1xi1>
    %62 = vector.broadcast %61 : vector<8x1xi1> to vector<8x128xi1>
    %63 = vector.broadcast %cst_26 : f32 to vector<8x128xf32>
    %64 = arith.select %62, %59, %63 : vector<8x128xi1>, vector<8x128xf32>
    %c7_27 = arith.constant 7 : index
    %c0_28 = arith.constant 0 : index
    %65 = vector.load %arg16[%c7_27, %c0_28] : memref<16x128xf32, #tpu.memory_space<vmem>>, vector<8x128xf32>
    %cst_29 = arith.constant 0.000000e+00 : f32
    %66 = vector.shape_cast %16 : vector<8x1xi1> to vector<8x1xi1>
    %67 = vector.broadcast %66 : vector<8x1xi1> to vector<8x128xi1>
    %68 = vector.broadcast %cst_29 : f32 to vector<8x128xf32>
    %69 = arith.select %67, %65, %68 : vector<8x128xi1>, vector<8x128xf32>
    %c1 = arith.constant 1 : index
    %c0_30 = arith.constant 0 : index
    %70 = vector.load %arg16[%c1, %c0_30] : memref<16x128xf32, #tpu.memory_space<vmem>>, vector<8x128xf32>
    %cst_31 = arith.constant 0.000000e+00 : f32
    %71 = vector.shape_cast %14 : vector<8x1xi1> to vector<8x1xi1>
    %72 = vector.broadcast %71 : vector<8x1xi1> to vector<8x128xi1>
    %73 = vector.broadcast %cst_31 : f32 to vector<8x128xf32>
    %74 = arith.select %72, %70, %73 : vector<8x128xi1>, vector<8x128xf32>
    %c1_32 = arith.constant 1 : index
    %c0_33 = arith.constant 0 : index
    %75 = vector.load %arg16[%c1_32, %c0_33] : memref<16x128xf32, #tpu.memory_space<vmem>>, vector<8x128xf32>
    %76 = arith.andi %8, %16 : vector<8x1xi1>
    %cst_34 = arith.constant 0.000000e+00 : f32
    %77 = vector.shape_cast %76 : vector<8x1xi1> to vector<8x1xi1>
    %78 = vector.broadcast %77 : vector<8x1xi1> to vector<8x128xi1>
    %79 = vector.broadcast %cst_34 : f32 to vector<8x128xf32>
    %80 = arith.select %78, %75, %79 : vector<8x128xi1>, vector<8x128xf32>
    %c2 = arith.constant 2 : index
    %c0_35 = arith.constant 0 : index
    %81 = vector.load %arg16[%c2, %c0_35] : memref<16x128xf32, #tpu.memory_space<vmem>>, vector<8x128xf32>
    %cst_36 = arith.constant 0.000000e+00 : f32
    %82 = vector.shape_cast %8 : vector<8x1xi1> to vector<8x1xi1>
    %83 = vector.broadcast %82 : vector<8x1xi1> to vector<8x128xi1>
    %84 = vector.broadcast %cst_36 : f32 to vector<8x128xf32>
    %85 = arith.select %83, %81, %84 : vector<8x128xi1>, vector<8x128xf32>
    %c3 = arith.constant 3 : index
    %c0_37 = arith.constant 0 : index
    %86 = vector.load %arg16[%c3, %c0_37] : memref<16x128xf32, #tpu.memory_space<vmem>>, vector<8x128xf32>
    %87 = arith.andi %8, %14 : vector<8x1xi1>
    %cst_38 = arith.constant 0.000000e+00 : f32
    %88 = vector.shape_cast %87 : vector<8x1xi1> to vector<8x1xi1>
    %89 = vector.broadcast %88 : vector<8x1xi1> to vector<8x128xi1>
    %90 = vector.broadcast %cst_38 : f32 to vector<8x128xf32>
    %91 = arith.select %89, %86, %90 : vector<8x128xi1>, vector<8x128xf32>
    %92 = tpu.concatenate %53, %58, %64, %69, %45, %74, %80, %85, %91 in 1 : vector<8x128xf32>, vector<8x128xf32>, vector<8x128xf32>, vector<8x128xf32>, vector<8x128xf32>, vector<8x128xf32>, vector<8x128xf32>, vector<8x128xf32>, vector<8x128xf32> -> vector<8x1152xf32>
    %93 = arith.truncf %92 : vector<8x1152xf32> to vector<8x1152xbf16>
    %c0_i32_39 = arith.constant 0 : i32
    %94 = tpu.memref_slice %arg18[%c0_i32_39] : memref<2x!tpu.dma_semaphore, #tpu.memory_space<semaphore_mem>> -> memref<1x!tpu.dma_semaphore, #tpu.memory_space<semaphore_mem>>
    %95 = tpu.memref_squeeze %94 : memref<1x!tpu.dma_semaphore, #tpu.memory_space<semaphore_mem>> -> memref<!tpu.dma_semaphore, #tpu.memory_space<semaphore_mem>>
    tpu.wait_dma2 semaphore(%95 : memref<!tpu.dma_semaphore, #tpu.memory_space<semaphore_mem>>) src(%arg5 : memref<1152x256xbf16, #tpu.memory_space<any>>) dst(%arg14 : memref<1152x256xbf16, #tpu.memory_space<vmem>>)
    %c0_40 = arith.constant 0 : index
    %c0_41 = arith.constant 0 : index
    %96 = vector.load %arg14[%c0_40, %c0_41] : memref<1152x256xbf16, #tpu.memory_space<vmem>>, vector<1152x256xbf16>
    %cst_42 = arith.constant dense<0.000000e+00> : vector<8x256xf32>
    %97 = tpu.matmul %93, %96, %cst_42 {dimension_numbers = #tpu.dot_dimension_numbers<[1], [0], [0], [1], [0, 0, 1, 1], [], []>} : vector<8x1152xbf16>, vector<1152x256xbf16>, vector<8x256xf32> -> vector<8x256xf32>
    %c0_43 = arith.constant 0 : index
    %c0_44 = arith.constant 0 : index
    %98 = vector.load %arg6[%c0_43, %c0_44] : memref<1x256xf32, #tpu.memory_space<vmem>>, vector<1x256xf32>
    %c0_45 = arith.constant 0 : index
    %c0_46 = arith.constant 0 : index
    %99 = vector.load %arg7[%c0_45, %c0_46] : memref<1x256xf32, #tpu.memory_space<vmem>>, vector<1x256xf32>
    %cst_47 = arith.constant dense<0.000000e+00> : vector<256xf32>
    %100 = vector.multi_reduction <add>, %97, %cst_47 [0] : vector<8x256xf32> to vector<256xf32>
    %101 = vector.shape_cast %100 : vector<256xf32> to vector<1x256xf32>
    %cst_48 = arith.constant 8.000000e+00 : f32
    %102 = vector.broadcast %cst_48 : f32 to vector<1x256xf32>
    %103 = arith.divf %101, %102 : vector<1x256xf32>
    %104 = vector.broadcast %103 : vector<1x256xf32> to vector<8x256xf32>
    %105 = arith.subf %97, %104 : vector<8x256xf32>
    %106 = arith.mulf %105, %105 : vector<8x256xf32>
    %cst_49 = arith.constant dense<0.000000e+00> : vector<256xf32>
    %107 = vector.multi_reduction <add>, %106, %cst_49 [0] : vector<8x256xf32> to vector<256xf32>
    %108 = vector.shape_cast %107 : vector<256xf32> to vector<1x256xf32>
    %cst_50 = arith.constant 8.000000e+00 : f32
    %109 = vector.broadcast %cst_50 : f32 to vector<1x256xf32>
    %110 = arith.divf %108, %109 : vector<1x256xf32>
    %cst_51 = arith.constant 9.99999974E-6 : f32
    %111 = vector.broadcast %cst_51 : f32 to vector<1x256xf32>
    %112 = arith.addf %110, %111 : vector<1x256xf32>
    %113 = math.rsqrt %112 : vector<1x256xf32>
    %114 = arith.mulf %98, %113 : vector<1x256xf32>
    %115 = vector.broadcast %114 : vector<1x256xf32> to vector<8x256xf32>
    %116 = arith.mulf %105, %115 : vector<8x256xf32>
    %117 = vector.broadcast %99 : vector<1x256xf32> to vector<8x256xf32>
    %118 = arith.addf %116, %117 : vector<8x256xf32>
    %cst_52 = arith.constant 0.000000e+00 : f32
    %119 = vector.broadcast %cst_52 : f32 to vector<8x256xf32>
    %120 = arith.cmpf oge, %118, %119 : vector<8x256xf32>
    %cst_53 = arith.constant 2.000000e-01 : f32
    %121 = vector.broadcast %cst_53 : f32 to vector<8x256xf32>
    %122 = arith.mulf %121, %118 : vector<8x256xf32>
    %123 = arith.select %120, %118, %122 : vector<8x256xi1>, vector<8x256xf32>
    %c0_54 = arith.constant 0 : index
    %c0_55 = arith.constant 0 : index
    %124 = vector.load %arg17[%c0_54, %c0_55] : memref<16x256xf32, #tpu.memory_space<vmem>>, vector<8x256xf32>
    tpu.vector_store %arg17[%c0_54, %c0_55], %123 {strides = array<i32>} : memref<16x256xf32, #tpu.memory_space<vmem>>, vector<8x256xf32>,
    %c8_56 = arith.constant 8 : index
    %c0_57 = arith.constant 0 : index
    %125 = vector.load %arg17[%c8_56, %c0_57] : memref<16x256xf32, #tpu.memory_space<vmem>>, vector<8x256xf32>
    tpu.vector_store %arg17[%c8_56, %c0_57], %123 {strides = array<i32>} : memref<16x256xf32, #tpu.memory_space<vmem>>, vector<8x256xf32>,
    %c5_58 = arith.constant 5 : index
    %c0_59 = arith.constant 0 : index
    %126 = vector.load %arg17[%c5_58, %c0_59] : memref<16x256xf32, #tpu.memory_space<vmem>>, vector<8x256xf32>
    %127 = arith.andi %10, %16 : vector<8x1xi1>
    %cst_60 = arith.constant 0.000000e+00 : f32
    %128 = vector.shape_cast %127 : vector<8x1xi1> to vector<8x1xi1>
    %129 = vector.broadcast %128 : vector<8x1xi1> to vector<8x256xi1>
    %130 = vector.broadcast %cst_60 : f32 to vector<8x256xf32>
    %131 = arith.select %129, %126, %130 : vector<8x256xi1>, vector<8x256xf32>
    %c6_61 = arith.constant 6 : index
    %c0_62 = arith.constant 0 : index
    %132 = vector.load %arg17[%c6_61, %c0_62] : memref<16x256xf32, #tpu.memory_space<vmem>>, vector<8x256xf32>
    %cst_63 = arith.constant 0.000000e+00 : f32
    %133 = vector.shape_cast %10 : vector<8x1xi1> to vector<8x1xi1>
    %134 = vector.broadcast %133 : vector<8x1xi1> to vector<8x256xi1>
    %135 = vector.broadcast %cst_63 : f32 to vector<8x256xf32>
    %136 = arith.select %134, %132, %135 : vector<8x256xi1>, vector<8x256xf32>
    %c7_64 = arith.constant 7 : index
    %c0_65 = arith.constant 0 : index
    %137 = vector.load %arg17[%c7_64, %c0_65] : memref<16x256xf32, #tpu.memory_space<vmem>>, vector<8x256xf32>
    %138 = arith.andi %10, %14 : vector<8x1xi1>
    %cst_66 = arith.constant 0.000000e+00 : f32
    %139 = vector.shape_cast %138 : vector<8x1xi1> to vector<8x1xi1>
    %140 = vector.broadcast %139 : vector<8x1xi1> to vector<8x256xi1>
    %141 = vector.broadcast %cst_66 : f32 to vector<8x256xf32>
    %142 = arith.select %140, %137, %141 : vector<8x256xi1>, vector<8x256xf32>
    %c7_67 = arith.constant 7 : index
    %c0_68 = arith.constant 0 : index
    %143 = vector.load %arg17[%c7_67, %c0_68] : memref<16x256xf32, #tpu.memory_space<vmem>>, vector<8x256xf32>
    %cst_69 = arith.constant 0.000000e+00 : f32
    %144 = vector.shape_cast %16 : vector<8x1xi1> to vector<8x1xi1>
    %145 = vector.broadcast %144 : vector<8x1xi1> to vector<8x256xi1>
    %146 = vector.broadcast %cst_69 : f32 to vector<8x256xf32>
    %147 = arith.select %145, %143, %146 : vector<8x256xi1>, vector<8x256xf32>
    %c1_70 = arith.constant 1 : index
    %c0_71 = arith.constant 0 : index
    %148 = vector.load %arg17[%c1_70, %c0_71] : memref<16x256xf32, #tpu.memory_space<vmem>>, vector<8x256xf32>
    %cst_72 = arith.constant 0.000000e+00 : f32
    %149 = vector.shape_cast %14 : vector<8x1xi1> to vector<8x1xi1>
    %150 = vector.broadcast %149 : vector<8x1xi1> to vector<8x256xi1>
    %151 = vector.broadcast %cst_72 : f32 to vector<8x256xf32>
    %152 = arith.select %150, %148, %151 : vector<8x256xi1>, vector<8x256xf32>
    %c1_73 = arith.constant 1 : index
    %c0_74 = arith.constant 0 : index
    %153 = vector.load %arg17[%c1_73, %c0_74] : memref<16x256xf32, #tpu.memory_space<vmem>>, vector<8x256xf32>
    %154 = arith.andi %8, %16 : vector<8x1xi1>
    %cst_75 = arith.constant 0.000000e+00 : f32
    %155 = vector.shape_cast %154 : vector<8x1xi1> to vector<8x1xi1>
    %156 = vector.broadcast %155 : vector<8x1xi1> to vector<8x256xi1>
    %157 = vector.broadcast %cst_75 : f32 to vector<8x256xf32>
    %158 = arith.select %156, %153, %157 : vector<8x256xi1>, vector<8x256xf32>
    %c2_76 = arith.constant 2 : index
    %c0_77 = arith.constant 0 : index
    %159 = vector.load %arg17[%c2_76, %c0_77] : memref<16x256xf32, #tpu.memory_space<vmem>>, vector<8x256xf32>
    %cst_78 = arith.constant 0.000000e+00 : f32
    %160 = vector.shape_cast %8 : vector<8x1xi1> to vector<8x1xi1>
    %161 = vector.broadcast %160 : vector<8x1xi1> to vector<8x256xi1>
    %162 = vector.broadcast %cst_78 : f32 to vector<8x256xf32>
    %163 = arith.select %161, %159, %162 : vector<8x256xi1>, vector<8x256xf32>
    %c3_79 = arith.constant 3 : index
    %c0_80 = arith.constant 0 : index
    %164 = vector.load %arg17[%c3_79, %c0_80] : memref<16x256xf32, #tpu.memory_space<vmem>>, vector<8x256xf32>
    %165 = arith.andi %8, %14 : vector<8x1xi1>
    %cst_81 = arith.constant 0.000000e+00 : f32
    %166 = vector.shape_cast %165 : vector<8x1xi1> to vector<8x1xi1>
    %167 = vector.broadcast %166 : vector<8x1xi1> to vector<8x256xi1>
    %168 = vector.broadcast %cst_81 : f32 to vector<8x256xf32>
    %169 = arith.select %167, %164, %168 : vector<8x256xi1>, vector<8x256xf32>
    %170 = tpu.concatenate %131, %136, %142, %147, %123, %152, %158, %163, %169 in 1 : vector<8x256xf32>, vector<8x256xf32>, vector<8x256xf32>, vector<8x256xf32>, vector<8x256xf32>, vector<8x256xf32>, vector<8x256xf32>, vector<8x256xf32>, vector<8x256xf32> -> vector<8x2304xf32>
    %171 = arith.truncf %170 : vector<8x2304xf32> to vector<8x2304xbf16>
    %c1_i32_82 = arith.constant 1 : i32
    %172 = tpu.memref_slice %arg18[%c1_i32_82] : memref<2x!tpu.dma_semaphore, #tpu.memory_space<semaphore_mem>> -> memref<1x!tpu.dma_semaphore, #tpu.memory_space<semaphore_mem>>
    %173 = tpu.memref_squeeze %172 : memref<1x!tpu.dma_semaphore, #tpu.memory_space<semaphore_mem>> -> memref<!tpu.dma_semaphore, #tpu.memory_space<semaphore_mem>>
    tpu.wait_dma2 semaphore(%173 : memref<!tpu.dma_semaphore, #tpu.memory_space<semaphore_mem>>) src(%arg8 : memref<2304x256xbf16, #tpu.memory_space<any>>) dst(%arg15 : memref<2304x256xbf16, #tpu.memory_space<vmem>>)
    %c0_83 = arith.constant 0 : index
    %c0_84 = arith.constant 0 : index
    %174 = vector.load %arg15[%c0_83, %c0_84] : memref<2304x256xbf16, #tpu.memory_space<vmem>>, vector<2304x256xbf16>
    %cst_85 = arith.constant dense<0.000000e+00> : vector<8x256xf32>
    %175 = tpu.matmul %171, %174, %cst_85 {dimension_numbers = #tpu.dot_dimension_numbers<[1], [0], [0], [1], [0, 0, 1, 1], [], []>} : vector<8x2304xbf16>, vector<2304x256xbf16>, vector<8x256xf32> -> vector<8x256xf32>
    %c0_86 = arith.constant 0 : index
    %c0_87 = arith.constant 0 : index
    %176 = vector.load %arg9[%c0_86, %c0_87] : memref<1x256xf32, #tpu.memory_space<vmem>>, vector<1x256xf32>
    %c0_88 = arith.constant 0 : index
    %c0_89 = arith.constant 0 : index
    %177 = vector.load %arg10[%c0_88, %c0_89] : memref<1x256xf32, #tpu.memory_space<vmem>>, vector<1x256xf32>
    %cst_90 = arith.constant dense<0.000000e+00> : vector<256xf32>
    %178 = vector.multi_reduction <add>, %175, %cst_90 [0] : vector<8x256xf32> to vector<256xf32>
    %179 = vector.shape_cast %178 : vector<256xf32> to vector<1x256xf32>
    %cst_91 = arith.constant 8.000000e+00 : f32
    %180 = vector.broadcast %cst_91 : f32 to vector<1x256xf32>
    %181 = arith.divf %179, %180 : vector<1x256xf32>
    %182 = vector.broadcast %181 : vector<1x256xf32> to vector<8x256xf32>
    %183 = arith.subf %175, %182 : vector<8x256xf32>
    %184 = arith.mulf %183, %183 : vector<8x256xf32>
    %cst_92 = arith.constant dense<0.000000e+00> : vector<256xf32>
    %185 = vector.multi_reduction <add>, %184, %cst_92 [0] : vector<8x256xf32> to vector<256xf32>
    %186 = vector.shape_cast %185 : vector<256xf32> to vector<1x256xf32>
    %cst_93 = arith.constant 8.000000e+00 : f32
    %187 = vector.broadcast %cst_93 : f32 to vector<1x256xf32>
    %188 = arith.divf %186, %187 : vector<1x256xf32>
    %cst_94 = arith.constant 9.99999974E-6 : f32
    %189 = vector.broadcast %cst_94 : f32 to vector<1x256xf32>
    %190 = arith.addf %188, %189 : vector<1x256xf32>
    %191 = math.rsqrt %190 : vector<1x256xf32>
    %192 = arith.mulf %176, %191 : vector<1x256xf32>
    %193 = vector.broadcast %192 : vector<1x256xf32> to vector<8x256xf32>
    %194 = arith.mulf %183, %193 : vector<8x256xf32>
    %195 = vector.broadcast %177 : vector<1x256xf32> to vector<8x256xf32>
    %196 = arith.addf %194, %195 : vector<8x256xf32>
    %cst_95 = arith.constant 0.000000e+00 : f32
    %197 = vector.broadcast %cst_95 : f32 to vector<8x256xf32>
    %198 = arith.cmpf oge, %196, %197 : vector<8x256xf32>
    %cst_96 = arith.constant 2.000000e-01 : f32
    %199 = vector.broadcast %cst_96 : f32 to vector<8x256xf32>
    %200 = arith.mulf %199, %196 : vector<8x256xf32>
    %201 = arith.select %198, %196, %200 : vector<8x256xi1>, vector<8x256xf32>
    %c0_97 = arith.constant 0 : index
    %c0_98 = arith.constant 0 : index
    %202 = vector.load %arg11[%c0_97, %c0_98] : memref<8x256xf32, #tpu.memory_space<vmem>>, vector<8x256xf32>
    %203 = arith.mulf %201, %202 : vector<8x256xf32>
    %204 = tpu.iota {dimensions = array<i32: 1>} : vector<2x8xi32>
    %205 = tpu.iota {dimensions = array<i32: 0>} : vector<2x8xi32>
    %c4_i32 = arith.constant 4 : i32
    %206 = vector.broadcast %c4_i32 : i32 to vector<2x8xi32>
    %207 = arith.muli %205, %206 : vector<2x8xi32>
    %208 = arith.cmpi sge, %204, %207 : vector<2x8xi32>
    %c4_i32_99 = arith.constant 4 : i32
    %209 = vector.broadcast %c4_i32_99 : i32 to vector<2x8xi32>
    %210 = arith.addi %207, %209 : vector<2x8xi32>
    %211 = arith.cmpi slt, %204, %210 : vector<2x8xi32>
    %212 = arith.andi %208, %211 : vector<2x8xi1>
    %213 = arith.extui %212 : vector<2x8xi1> to vector<2x8xi32>
    %214 = arith.sitofp %213 : vector<2x8xi32> to vector<2x8xf32>
    %cst_100 = arith.constant dense<0.000000e+00> : vector<2x256xf32>
    %215 = tpu.matmul %214, %203, %cst_100 {dimension_numbers = #tpu.dot_dimension_numbers<[1], [0], [0], [1], [0, 0, 1, 1], [], []>} : vector<2x8xf32>, vector<8x256xf32>, vector<2x256xf32> -> vector<2x256xf32>
    %cst_101 = arith.constant dense<0.000000e+00> : vector<2xf32>
    %216 = vector.multi_reduction <add>, %215, %cst_101 [1] : vector<2x256xf32> to vector<2xf32>
    %217 = vector.shape_cast %216 : vector<2xf32> to vector<2x1xf32>
    %c0_102 = arith.constant 0 : index
    %c0_103 = arith.constant 0 : index
    %218 = vector.load %arg12[%c0_102, %c0_103] : memref<1x1xf32, #tpu.memory_space<vmem>>, vector<1x1xf32>
    %219 = vector.broadcast %218 : vector<1x1xf32> to vector<2x1xf32>
    %220 = arith.addf %217, %219 : vector<2x1xf32>
    %c0_104 = arith.constant 0 : index
    %c0_105 = arith.constant 0 : index
    %221 = vector.load %arg13[%c0_104, %c0_105] : memref<2x1xf32, #tpu.memory_space<vmem>>, vector<2x1xf32>
    tpu.vector_store %arg13[%c0_104, %c0_105], %220 {strides = array<i32>} : memref<2x1xf32, #tpu.memory_space<vmem>>, vector<2x1xf32>,
    return
  }
  func.func @transform_0(%arg0: i32) -> (i32, i32) {
    %c0_i32 = arith.constant 0 : i32
    %c0_i32_0 = arith.constant 0 : i32
    %c0_i32_1 = arith.constant 0 : i32
    return %c0_i32, %c0_i32_0 : i32, i32
  }
  func.func @transform_1(%arg0: i32) -> (i32, i32) {
    %c0_i32 = arith.constant 0 : i32
    %c0_i32_0 = arith.constant 0 : i32
    %c0_i32_1 = arith.constant 0 : i32
    return %c0_i32, %c0_i32_0 : i32, i32
  }
  func.func @transform_2(%arg0: i32) -> (i32, i32) {
    %c0_i32 = arith.constant 0 : i32
    %c0_i32_0 = arith.constant 0 : i32
    %c0_i32_1 = arith.constant 0 : i32
    return %c0_i32, %c0_i32_0 : i32, i32
  }
  func.func @transform_3(%arg0: i32) -> (i32, i32) {
    %c0_i32 = arith.constant 0 : i32
    %c0_i32_0 = arith.constant 0 : i32
    %c0_i32_1 = arith.constant 0 : i32
    return %c0_i32, %c0_i32_0 : i32, i32
  }
  func.func @transform_5(%arg0: i32) -> (i32, i32) {
    %c0_i32 = arith.constant 0 : i32
    %c0_i32_0 = arith.constant 0 : i32
    %c0_i32_1 = arith.constant 0 : i32
    return %c0_i32, %c0_i32_0 : i32, i32
  }
  func.func @transform_6(%arg0: i32) -> (i32, i32) {
    %c0_i32 = arith.constant 0 : i32
    %c0_i32_0 = arith.constant 0 : i32
    %c0_i32_1 = arith.constant 0 : i32
    return %c0_i32, %c0_i32_0 : i32, i32
  }
  func.func @transform_8(%arg0: i32) -> (i32, i32) {
    %c0_i32 = arith.constant 0 : i32
    %c0_i32_0 = arith.constant 0 : i32
    %c0_i32_1 = arith.constant 0 : i32
    return %c0_i32, %c0_i32_0 : i32, i32
  }
  func.func @transform_9(%arg0: i32) -> (i32, i32) {
    %c0_i32 = arith.constant 0 : i32
    %c0_i32_0 = arith.constant 0 : i32
    %c0_i32_1 = arith.constant 0 : i32
    return %c0_i32, %c0_i32_0 : i32, i32
  }
  func.func @transform_10(%arg0: i32) -> (i32, i32) {
    %c0_i32 = arith.constant 0 : i32
    %c0_i32_0 = arith.constant 0 : i32
    %c0_i32_1 = arith.constant 0 : i32
    return %c0_i32, %c0_i32_0 : i32, i32
  }
  func.func @transform_11(%arg0: i32) -> (i32, i32) {
    %c0_i32 = arith.constant 0 : i32
    %c0_i32_0 = arith.constant 0 : i32
    %c0_i32_1 = arith.constant 0 : i32
    return %c0_i32, %c0_i32_0 : i32, i32
  }
  func.func @transform_12(%arg0: i32) -> (i32, i32) {
    %c0_i32 = arith.constant 0 : i32
    %c0_i32_0 = arith.constant 0 : i32
    %c0_i32_1 = arith.constant 0 : i32
    return %c0_i32, %c0_i32_0 : i32, i32
  }
}

</mosaic_0001>

<llo_original>
// kernel: mul.11
$region0: #{mul.11}
  %s0 = inlined_call_operand.vmem [shape: f32[2,4,4,3], index: 0, kind: input, shape index: {}]
  %s1 = inlined_call_operand.vmem [shape: f32[2,48], index: 1, kind: output, shape index: {}]
  $region1: #{mul.11} parent=0
    #allocation0 [shape = 'u8[4096]{0}', space=vmem, size = 0x1000, scoped, tag = 'scoped mem for output reshape']
    #allocation1 [shape = 'u8[32768]{0}', space=vmem, size = 0x8000, scoped, tag = 'scoped mem for input reshape']
    %s3 = sshllo.u32 0, 4
    %s4 = smul.addr 4, 7
    %s5 = scalar_lea.vmem %s0, %s4
    %v6 = vld [vmem:[%s5] sm:%s3]
    %s7 = scalar_lea.vmem [#allocation1], 56
    %8 = vst [vmem:[%s7] sm:%s3] %v6
    %s9 = smul.addr 4, 6
    %s10 = scalar_lea.vmem %s0, %s9
    %v11 = vld [vmem:[%s10] sm:%s3]
    %s12 = scalar_lea.vmem [#allocation1], 48
    %13 = vst [vmem:[%s12] sm:%s3] %v11
    %s14 = smul.addr 4, 5
    %s15 = scalar_lea.vmem %s0, %s14
    %v16 = vld [vmem:[%s15] sm:%s3]
    %s17 = scalar_lea.vmem [#allocation1], 40
    %18 = vst [vmem:[%s17] sm:%s3] %v16
    %s19 = smul.addr 4, 4
    %s20 = scalar_lea.vmem %s0, %s19
    %v21 = vld [vmem:[%s20] sm:%s3]
    %s22 = scalar_lea.vmem [#allocation1], 32
    %23 = vst [vmem:[%s22] sm:%s3] %v21
    %s24 = smul.addr 4, 3
    %s25 = scalar_lea.vmem %s0, %s24
    %v26 = vld [vmem:[%s25] sm:%s3]
    %s27 = scalar_lea.vmem [#allocation1], 24
    %28 = vst [vmem:[%s27] sm:%s3] %v26
    %s29 = smul.addr 4, 2
    %s30 = scalar_lea.vmem %s0, %s29
    %v31 = vld [vmem:[%s30] sm:%s3]
    %s32 = scalar_lea.vmem [#allocation1], 16
    %33 = vst [vmem:[%s32] sm:%s3] %v31
    %s34 = scalar_lea.vmem %s0, 4
    %v35 = vld [vmem:[%s34] sm:%s3]
    %s36 = scalar_lea.vmem [#allocation1], 8
    %37 = vst [vmem:[%s36] sm:%s3] %v35
    %v38 = vld [vmem:[%s0] sm:%s3]
    %39 = vst [vmem:[#allocation1] sm:%s3] %v38
    %v40 = vld [vmem:[#allocation1] sm:$0x1]
    %s41 = scalar_lea.vmem [#allocation1], 31
    %v42 = vld [vmem:[%s41] sm:$0x2]
    %vm43 = vcmask 1041409
    %v44 = vsel %vm43, %v42, %v40
    %vm45 = vcmask 23552
    %46 = vst.msk [vmem:[#allocation0] sm:$0x3] %vm45, %v44
    %s47 = scalar_lea.vmem [#allocation1], 27
    %v48 = vld [vmem:[%s47] sm:$0x1]
    %s49 = scalar_lea.vmem [#allocation1], 58
    %v50 = vld [vmem:[%s49] sm:$0x2]
    %vm51 = vcmask 1041409
    %v52 = vsel %vm51, %v50, %v48
    %53 = vrot.lane.b32.xlu0 %v52, 45
    %v54 = vpop.permute.xlu0 %53
    %vm55 = vcmask 392552
    %56 = vst.msk [vmem:[#allocation0] sm:$0x3] %vm55, %v54
    %s57 = scalar_lea.vmem [#allocation1], 26
    %v58 = vld [vmem:[%s57] sm:$0x1]
    %s59 = scalar_lea.vmem [#allocation1], 57
    %v60 = vld [vmem:[%s59] sm:$0x2]
    %vm61 = vcmask 1041409
    %v62 = vsel %vm61, %v60, %v58
    %63 = vrot.lane.b32.xlu0 %v62, 42
    %v64 = vpop.permute.xlu0 %63
    %vm65 = vcmask 367952
    %66 = vst.msk [vmem:[#allocation0] sm:$0x3] %vm65, %v64
    %s67 = scalar_lea.vmem [#allocation1], 25
    %v68 = vld [vmem:[%s67] sm:$0x1]
    %s69 = scalar_lea.vmem [#allocation1], 56
    %v70 = vld [vmem:[%s69] sm:$0x2]
    %vm71 = vcmask 1041409
    %v72 = vsel %vm71, %v70, %v68
    %73 = vrot.lane.b32.xlu0 %v72, 39
    %v74 = vpop.permute.xlu0 %73
    %vm75 = vcmask 343352
    %76 = vst.msk [vmem:[#allocation0] sm:$0x3] %vm75, %v74
    %s77 = scalar_lea.vmem [#allocation1], 24
    %v78 = vld [vmem:[%s77] sm:$0x1]
    %s79 = scalar_lea.vmem [#allocation1], 55
    %v80 = vld [vmem:[%s79] sm:$0x2]
    %vm81 = vcmask 1041409
    %v82 = vsel %vm81, %v80, %v78
    %83 = vrot.lane.b32.xlu0 %v82, 36
    %v84 = vpop.permute.xlu0 %83
    %vm85 = vcmask 318752
    %86 = vst.msk [vmem:[#allocation0] sm:$0x3] %vm85, %v84
    %s87 = scalar_lea.vmem [#allocation1], 19
    %v88 = vld [vmem:[%s87] sm:$0x1]
    %s89 = scalar_lea.vmem [#allocation1], 50
    %v90 = vld [vmem:[%s89] sm:$0x2]
    %vm91 = vcmask 1041409
    %v92 = vsel %vm91, %v90, %v88
    %93 = vrot.lane.b32.xlu0 %v92, 33
    %v94 = vpop.permute.xlu0 %93
    %vm95 = vcmask 294152
    %96 = vst.msk [vmem:[#allocation0] sm:$0x3] %vm95, %v94
    %s97 = scalar_lea.vmem [#allocation1], 18
    %v98 = vld [vmem:[%s97] sm:$0x1]
    %s99 = scalar_lea.vmem [#allocation1], 49
    %v100 = vld [vmem:[%s99] sm:$0x2]
    %vm101 = vcmask 1041409
    %v102 = vsel %vm101, %v100, %v98
    %103 = vrot.lane.b32.xlu0 %v102, 30
    %v104 = vpop.permute.xlu0 %103
    %vm105 = vcmask 269552
    %106 = vst.msk [vmem:[#allocation0] sm:$0x3] %vm105, %v104
    %s107 = scalar_lea.vmem [#allocation1], 17
    %v108 = vld [vmem:[%s107] sm:$0x1]
    %s109 = scalar_lea.vmem [#allocation1], 48
    %v110 = vld [vmem:[%s109] sm:$0x2]
    %vm111 = vcmask 1041409
    %v112 = vsel %vm111, %v110, %v108
    %113 = vrot.lane.b32.xlu0 %v112, 27
    %v114 = vpop.permute.xlu0 %113
    %vm115 = vcmask 244952
    %116 = vst.msk [vmem:[#allocation0] sm:$0x3] %vm115, %v114
    %s117 = scalar_lea.vmem [#allocation1], 16
    %v118 = vld [vmem:[%s117] sm:$0x1]
    %s119 = scalar_lea.vmem [#allocation1], 47
    %v120 = vld [vmem:[%s119] sm:$0x2]
    %vm121 = vcmask 1041409
    %v122 = vsel %vm121, %v120, %v118
    %123 = vrot.lane.b32.xlu0 %v122, 24
    %v124 = vpop.permute.xlu0 %123
    %vm125 = vcmask 220352
    %126 = vst.msk [vmem:[#allocation0] sm:$0x3] %vm125, %v124
    %s127 = scalar_lea.vmem [#allocation1], 11
    %v128 = vld [vmem:[%s127] sm:$0x1]
    %s129 = scalar_lea.vmem [#allocation1], 42
    %v130 = vld [vmem:[%s129] sm:$0x2]
    %vm131 = vcmask 1041409
    %v132 = vsel %vm131, %v130, %v128
    %133 = vrot.lane.b32.xlu0 %v132, 21
    %v134 = vpop.permute.xlu0 %133
    %vm135 = vcmask 195752
    %136 = vst.msk [vmem:[#allocation0] sm:$0x3] %vm135, %v134
    %s137 = scalar_lea.vmem [#allocation1], 10
    %v138 = vld [vmem:[%s137] sm:$0x1]
    %s139 = scalar_lea.vmem [#allocation1], 41
    %v140 = vld [vmem:[%s139] sm:$0x2]
    %vm141 = vcmask 1041409
    %v142 = vsel %vm141, %v140, %v138
    %143 = vrot.lane.b32.xlu0 %v142, 18
    %v144 = vpop.permute.xlu0 %143
    %vm145 = vcmask 171152
    %146 = vst.msk [vmem:[#allocation0] sm:$0x3] %vm145, %v144
    %s147 = scalar_lea.vmem [#allocation1], 9
    %v148 = vld [vmem:[%s147] sm:$0x1]
    %s149 = scalar_lea.vmem [#allocation1], 40
    %v150 = vld [vmem:[%s149] sm:$0x2]
    %vm151 = vcmask 1041409
    %v152 = vsel %vm151, %v150, %v148
    %153 = vrot.lane.b32.xlu0 %v152, 15
    %v154 = vpop.permute.xlu0 %153
    %vm155 = vcmask 146552
    %156 = vst.msk [vmem:[#allocation0] sm:$0x3] %vm155, %v154
    %s157 = scalar_lea.vmem [#allocation1], 8
    %v158 = vld [vmem:[%s157] sm:$0x1]
    %s159 = scalar_lea.vmem [#allocation1], 39
    %v160 = vld [vmem:[%s159] sm:$0x2]
    %vm161 = vcmask 1041409
    %v162 = vsel %vm161, %v160, %v158
    %163 = vrot.lane.b32.xlu0 %v162, 12
    %v164 = vpop.permute.xlu0 %163
    %vm165 = vcmask 121952
    %166 = vst.msk [vmem:[#allocation0] sm:$0x3] %vm165, %v164
    %s167 = scalar_lea.vmem [#allocation1], 3
    %v168 = vld [vmem:[%s167] sm:$0x1]
    %s169 = scalar_lea.vmem [#allocation1], 34
    %v170 = vld [vmem:[%s169] sm:$0x2]
    %vm171 = vcmask 1041409
    %v172 = vsel %vm171, %v170, %v168
    %173 = vrot.lane.b32.xlu0 %v172, 9
    %v174 = vpop.permute.xlu0 %173
    %vm175 = vcmask 97352
    %176 = vst.msk [vmem:[#allocation0] sm:$0x3] %vm175, %v174
    %s177 = scalar_lea.vmem [#allocation1], 2
    %v178 = vld [vmem:[%s177] sm:$0x1]
    %s179 = scalar_lea.vmem [#allocation1], 33
    %v180 = vld [vmem:[%s179] sm:$0x2]
    %vm181 = vcmask 1041409
    %v182 = vsel %vm181, %v180, %v178
    %183 = vrot.lane.b32.xlu0 %v182, 6
    %v184 = vpop.permute.xlu0 %183
    %vm185 = vcmask 72752
    %186 = vst.msk [vmem:[#allocation0] sm:$0x3] %vm185, %v184
    %s187 = scalar_lea.vmem [#allocation1], 1
    %v188 = vld [vmem:[%s187] sm:$0x1]
    %s189 = scalar_lea.vmem [#allocation1], 32
    %v190 = vld [vmem:[%s189] sm:$0x2]
    %vm191 = vcmask 1041409
    %v192 = vsel %vm191, %v190, %v188
    %193 = vrot.lane.b32.xlu0 %v192, 3
    %v194 = vpop.permute.xlu0 %193
    %vm195 = vcmask 48152
    %196 = vst.msk [vmem:[#allocation0] sm:$0x3] %vm195, %v194
    %s198 = sshllo.u32 0, 2
    %v200 = vld [vmem:[#allocation0] sm:%s198]
    %s201 = sshllo.u32 0, 2
    %202 = vst [vmem:[%s1] sm:%s201] %v200

// kernel: descriptor4_forward.1
$region0: #{descriptor4_forward.1}
  #allocation0 [shape = 'u32[]', space=smem, size = 0x4, offset = 0x4, fixed_abs, tag = 'smem constant byte address 0x4 - core index']
  #allocation1 [shape = 'u32[144,128]{1,0:T(1,128)}', space=vmem, size = 0x12000, scoped, tag = 'internal scratch']
  #allocation2 [shape = 'bf16[1152,256]{1,0:T(16,128)(2,1)}', space=vmem, size = 0x90000, scoped, tag = 'scratch operand']
  #allocation3 [shape = 'bf16[2304,256]{1,0:T(16,128)(2,1)}', space=vmem, size = 0x120000, scoped, tag = 'scratch operand']
  #allocation4 [shape = 'f32[16,128]{1,0:T(8,128)}', space=vmem, size = 0x2000, scoped, tag = 'scratch operand']
  #allocation5 [shape = 'f32[16,256]{1,0:T(8,128)}', space=vmem, size = 0x4000, scoped, tag = 'scratch operand']
  #allocation6 [shape = 's32[2]{0}', space=sflag, size = 0x8, scoped, tag = 'scratch operand']
  #allocation7 [shape = 'f32[1,1]{1,0:T(1,128)S(1)}', space=vmem, size = 0x200, scoped, tag = 'scoped memory for descriptor4_forward.1']
  #allocation21 [shape = 's32[]', space=sflag, size = 0x4, offset = 0, fixed_abs, tag = 'sflag constant byte address 0x0 - dummy sync flag']
  #allocation23 [shape = 's32[]', space=sflag, size = 0x4, offset = 0, fixed_abs, tag = 'sflag constant byte address 0x0 - dummy sync flag']
  %s0 = inlined_call_operand.vmem [shape: f32[8,192], index: 0, kind: input, shape index: {}]
  %s1 = inlined_call_operand.hbm [shape: f32[192,128], index: 1, kind: input, shape index: {}]
  %s2 = inlined_call_operand.hbm [shape: f32[1,128], index: 2, kind: input, shape index: {}]
  %s3 = inlined_call_operand.hbm [shape: f32[1,128], index: 3, kind: input, shape index: {}]
  %s4 = inlined_call_operand.hbm [shape: bf16[1152,256], index: 4, kind: input, shape index: {}]
  %s5 = inlined_call_operand.hbm [shape: f32[1,256], index: 5, kind: input, shape index: {}]
  %s6 = inlined_call_operand.hbm [shape: f32[1,256], index: 6, kind: input, shape index: {}]
  %s7 = inlined_call_operand.hbm [shape: bf16[2304,256], index: 7, kind: input, shape index: {}]
  %s8 = inlined_call_operand.hbm [shape: f32[1,256], index: 8, kind: input, shape index: {}]
  %s9 = inlined_call_operand.hbm [shape: f32[1,256], index: 9, kind: input, shape index: {}]
  %s10 = inlined_call_operand.hbm [shape: f32[8,256], index: 10, kind: input, shape index: {}]
  %s11 = inlined_call_operand.<no memory space> [shape: f32[1,1], index: 11, kind: input, shape index: {}]
  %s12 = inlined_call_operand.vmem [shape: f32[2,1], index: 12, kind: output, shape index: {}]
  %s13 = sld [smem:[#allocation0]]
  $region82: #{descriptor4_forward.1} parent=0
    _
  %s15 = ssub.s32 1, %s13
  %s16 = scalar_select 0, %s15, %s13
  %v17 = vstv %s11
  %18 = vst [vmem:[#allocation7] sm:$0x1] %v17
  $region1: #{descriptor4_forward.1} parent=0
    #allocation8 [shape = 'u8[98304]{0}', space=vmem, size = 0x18000, scoped, tag = 'input window, operand 1, single buffered']
    #allocation9 [shape = 's32[1]{0}', space=sflag, size = 0x4, scoped, tag = 'scoped memory for descriptor4_forward.1']
    #allocation10 [shape = 'u8[512]{0}', space=vmem, size = 0x400, scoped, tag = 'input window, operand 2, single buffered']
    #allocation11 [shape = 's32[1]{0}', space=sflag, size = 0x4, scoped, tag = 'scoped memory for descriptor4_forward.1']
    #allocation12 [shape = 'u8[512]{0}', space=vmem, size = 0x400, scoped, tag = 'input window, operand 3, single buffered']
    #allocation13 [shape = 'u8[1024]{0}', space=vmem, size = 0x400, scoped, tag = 'input window, operand 5, single buffered']
    #allocation14 [shape = 's32[1]{0}', space=sflag, size = 0x4, scoped, tag = 'scoped memory for descriptor4_forward.1']
    #allocation15 [shape = 'u8[1024]{0}', space=vmem, size = 0x400, scoped, tag = 'input window, operand 6, single buffered']
    #allocation16 [shape = 'u8[1024]{0}', space=vmem, size = 0x400, scoped, tag = 'input window, operand 8, single buffered']
    #allocation17 [shape = 's32[1]{0}', space=sflag, size = 0x4, scoped, tag = 'scoped memory for descriptor4_forward.1']
    #allocation18 [shape = 'u8[1024]{0}', space=vmem, size = 0x400, scoped, tag = 'input window, operand 9, single buffered']
    #allocation19 [shape = 'u8[8192]{0}', space=vmem, size = 0x2000, scoped, tag = 'input window, operand 10, single buffered']
    #allocation20 [shape = 's32[1]{0}', space=sflag, size = 0x4, scoped, tag = 'scoped memory for descriptor4_forward.1']
    #allocation22 [shape = 'u32[9]{0}', space=smem, size = 0x24, scoped, tag = 'DMA stride descriptor']
    #allocation24 [shape = 'u32[9]{0}', space=smem, size = 0x24, scoped, tag = 'DMA stride descriptor']
    %19 = vsyncpa [#allocation9], 0
    %20 = vsyncpa [#allocation11], 0
    %21 = vsyncpa [#allocation14], 0
    %22 = vsyncpa [#allocation17], 0
    %23 = vsyncpa [#allocation20], 0
    // Predicated region
    $region2: #{descriptor4_forward.1} parent=1 // pred_check
      _
    $region3: #{descriptor4_forward.1} parent=1 // pred_check_branch
      %25 = sbr.rel (0) target = $region5
    $region4: #{descriptor4_forward.1} parent=1 // pred_region
      _
    $region5: #{descriptor4_forward.1} parent=1 // pred_fallthru
      _
    // Predicated region
    $region6: #{descriptor4_forward.1} parent=1 // pred_check
      _
    $region7: #{descriptor4_forward.1} parent=1 // pred_check_branch
      %27 = sbr.rel (0) target = $region9
    $region8: #{descriptor4_forward.1} parent=1 // pred_region
      %s29 = ssub.s32 3072, 3072
      %30 = vsyncadd [#allocation9], %s29
      %s31 = sshll.u32 [#allocation8], 4
      %s32 = int_to_ptr.vmem [resolvable:$true] %s31
      %37 = dma.hbm_to_vmem [thread:$0]  %s1, 3072, %s32, [#allocation9], 128, 128, 8
    $region9: #{descriptor4_forward.1} parent=1 // pred_fallthru
      _
    // Predicated region
    $region10: #{descriptor4_forward.1} parent=1 // pred_check
      _
    $region11: #{descriptor4_forward.1} parent=1 // pred_check_branch
      %39 = sbr.rel (0) target = $region13
    $region12: #{descriptor4_forward.1} parent=1 // pred_region
      %s41 = ssub.s32 16, 16
      %42 = vsyncadd [#allocation11], %s41
      %s44 = sshll.u32 [#allocation10], 4
      %s45 = int_to_ptr.vmem [resolvable:$true] %s44
      %47 = dma.hbm_to_vmem [thread:$0]  %s2, 16, %s45, [#allocation11]
    $region13: #{descriptor4_forward.1} parent=1 // pred_fallthru
      _
    // Predicated region
    $region14: #{descriptor4_forward.1} parent=1 // pred_check
      _
    $region15: #{descriptor4_forward.1} parent=1 // pred_check_branch
      %49 = sbr.rel (0) target = $region17
    $region16: #{descriptor4_forward.1} parent=1 // pred_region
      %s51 = ssub.s32 16, 16
      %52 = vsyncadd [#allocation11], %s51
      %s54 = sshll.u32 [#allocation12], 4
      %s55 = int_to_ptr.vmem [resolvable:$true] %s54
      %57 = dma.hbm_to_vmem [thread:$0]  %s3, 16, %s55, [#allocation11]
    $region17: #{descriptor4_forward.1} parent=1 // pred_fallthru
      _
    // Predicated region
    $region18: #{descriptor4_forward.1} parent=1 // pred_check
      _
    $region19: #{descriptor4_forward.1} parent=1 // pred_check_branch
      %59 = sbr.rel (0) target = $region21
    $region20: #{descriptor4_forward.1} parent=1 // pred_region
      %s61 = ssub.s32 32, 32
      %62 = vsyncadd [#allocation14], %s61
      %s64 = sshll.u32 [#allocation13], 4
      %s65 = int_to_ptr.vmem [resolvable:$true] %s64
      %67 = dma.hbm_to_vmem [thread:$0]  %s5, 32, %s65, [#allocation14]
    $region21: #{descriptor4_forward.1} parent=1 // pred_fallthru
      _
    // Predicated region
    $region22: #{descriptor4_forward.1} parent=1 // pred_check
      _
    $region23: #{descriptor4_forward.1} parent=1 // pred_check_branch
      %69 = sbr.rel (0) target = $region25
    $region24: #{descriptor4_forward.1} parent=1 // pred_region
      %s71 = ssub.s32 32, 32
      %72 = vsyncadd [#allocation14], %s71
      %s74 = sshll.u32 [#allocation15], 4
      %s75 = int_to_ptr.vmem [resolvable:$true] %s74
      %77 = dma.hbm_to_vmem [thread:$0]  %s6, 32, %s75, [#allocation14]
    $region25: #{descriptor4_forward.1} parent=1 // pred_fallthru
      _
    // Predicated region
    $region26: #{descriptor4_forward.1} parent=1 // pred_check
      _
    $region27: #{descriptor4_forward.1} parent=1 // pred_check_branch
      %79 = sbr.rel (0) target = $region29
    $region28: #{descriptor4_forward.1} parent=1 // pred_region
      %s81 = ssub.s32 32, 32
      %82 = vsyncadd [#allocation17], %s81
      %s84 = sshll.u32 [#allocation16], 4
      %s85 = int_to_ptr.vmem [resolvable:$true] %s84
      %87 = dma.hbm_to_vmem [thread:$0]  %s8, 32, %s85, [#allocation17]
    $region29: #{descriptor4_forward.1} parent=1 // pred_fallthru
      _
    // Predicated region
    $region30: #{descriptor4_forward.1} parent=1 // pred_check
      _
    $region31: #{descriptor4_forward.1} parent=1 // pred_check_branch
      %89 = sbr.rel (0) target = $region33
    $region32: #{descriptor4_forward.1} parent=1 // pred_region
      %s91 = ssub.s32 32, 32
      %92 = vsyncadd [#allocation17], %s91
      %s94 = sshll.u32 [#allocation18], 4
      %s95 = int_to_ptr.vmem [resolvable:$true] %s94
      %97 = dma.hbm_to_vmem [thread:$0]  %s9, 32, %s95, [#allocation17]
    $region33: #{descriptor4_forward.1} parent=1 // pred_fallthru
      _
    // Predicated region
    $region34: #{descriptor4_forward.1} parent=1 // pred_check
      _
    $region35: #{descriptor4_forward.1} parent=1 // pred_check_branch
      %99 = sbr.rel (0) target = $region37
    $region36: #{descriptor4_forward.1} parent=1 // pred_region
      %s101 = ssub.s32 256, 256
      %102 = vsyncadd [#allocation20], %s101
      %s104 = sshll.u32 [#allocation19], 4
      %s105 = int_to_ptr.vmem [resolvable:$true] %s104
      %107 = dma.hbm_to_vmem [thread:$0]  %s10, 256, %s105, [#allocation20]
    $region37: #{descriptor4_forward.1} parent=1 // pred_fallthru
      _
    // Predicated region
    $region38: #{descriptor4_forward.1} parent=1 // pred_check
      _
    $region39: #{descriptor4_forward.1} parent=1 // pred_check_branch
      %109 = sbr.rel (0) target = $region41
    $region40: #{descriptor4_forward.1} parent=1 // pred_region
      _
    $region41: #{descriptor4_forward.1} parent=1 // pred_fallthru
      _
    // Predicated region
    $region42: #{descriptor4_forward.1} parent=1 // pred_check
      _
    $region43: #{descriptor4_forward.1} parent=1 // pred_check_branch
      %111 = sbr.rel (0) target = $region45
    $region44: #{descriptor4_forward.1} parent=1 // pred_region
      %112 = dma.done [#allocation9], 3072
    $region45: #{descriptor4_forward.1} parent=1 // pred_fallthru
      _
    // Predicated region
    $region46: #{descriptor4_forward.1} parent=1 // pred_check
      _
    $region47: #{descriptor4_forward.1} parent=1 // pred_check_branch
      %114 = sbr.rel (0) target = $region49
    $region48: #{descriptor4_forward.1} parent=1 // pred_region
      %115 = dma.done [#allocation11], 16
    $region49: #{descriptor4_forward.1} parent=1 // pred_fallthru
      _
    // Predicated region
    $region50: #{descriptor4_forward.1} parent=1 // pred_check
      _
    $region51: #{descriptor4_forward.1} parent=1 // pred_check_branch
      %117 = sbr.rel (0) target = $region53
    $region52: #{descriptor4_forward.1} parent=1 // pred_region
      %118 = dma.done [#allocation11], 16
    $region53: #{descriptor4_forward.1} parent=1 // pred_fallthru
      _
    // Predicated region
    $region54: #{descriptor4_forward.1} parent=1 // pred_check
      _
    $region55: #{descriptor4_forward.1} parent=1 // pred_check_branch
      %120 = sbr.rel (0) target = $region57
    $region56: #{descriptor4_forward.1} parent=1 // pred_region
      %121 = dma.done [#allocation14], 32
    $region57: #{descriptor4_forward.1} parent=1 // pred_fallthru
      _
    // Predicated region
    $region58: #{descriptor4_forward.1} parent=1 // pred_check
      _
    $region59: #{descriptor4_forward.1} parent=1 // pred_check_branch
      %123 = sbr.rel (0) target = $region61
    $region60: #{descriptor4_forward.1} parent=1 // pred_region
      %124 = dma.done [#allocation14], 32
    $region61: #{descriptor4_forward.1} parent=1 // pred_fallthru
      _
    // Predicated region
    $region62: #{descriptor4_forward.1} parent=1 // pred_check
      _
    $region63: #{descriptor4_forward.1} parent=1 // pred_check_branch
      %126 = sbr.rel (0) target = $region65
    $region64: #{descriptor4_forward.1} parent=1 // pred_region
      %127 = dma.done [#allocation17], 32
    $region65: #{descriptor4_forward.1} parent=1 // pred_fallthru
      _
    // Predicated region
    $region66: #{descriptor4_forward.1} parent=1 // pred_check
      _
    $region67: #{descriptor4_forward.1} parent=1 // pred_check_branch
      %129 = sbr.rel (0) target = $region69
    $region68: #{descriptor4_forward.1} parent=1 // pred_region
      %130 = dma.done [#allocation17], 32
    $region69: #{descriptor4_forward.1} parent=1 // pred_fallthru
      _
    // Predicated region
    $region70: #{descriptor4_forward.1} parent=1 // pred_check
      _
    $region71: #{descriptor4_forward.1} parent=1 // pred_check_branch
      %132 = sbr.rel (0) target = $region73
    $region72: #{descriptor4_forward.1} parent=1 // pred_region
      %133 = dma.done [#allocation20], 256
    $region73: #{descriptor4_forward.1} parent=1 // pred_fallthru
      _
    %s136 = sshll.u32 1, 14
    %s137 = sxor.u32 4294967295, %s136
    %s139 = sld [smem:[#allocation0]]
    %s140 = sadd.s32 2, %s139
    %s142 = sshll.u32 7, 26
    %s143 = sxor.u32 4294967295, %s142
    %s144 = sand.u32 0, %s143
    %s145 = sshll.u32 %s140, 26
    %s146 = sor.u32 %s144, %s145
    %s147 = sshll.u32 [#allocation2], 4
    %s148 = int_to_ptr.vmem [resolvable:$true] %s147
    %151 = sst [smem:[#allocation22]] 256
    %s152 = scalar_lea.smem [#allocation22], 1
    %153 = sst [smem:[%s152]] 256
    %s154 = scalar_lea.smem [#allocation22], 2
    %155 = sst [smem:[%s154]] 2
    %s156 = scalar_lea.smem [#allocation22], 3
    %157 = sst [smem:[%s156]] 64
    %s158 = scalar_lea.smem [#allocation22], 4
    %159 = sst [smem:[%s158]] 128
    %s160 = scalar_lea.smem [#allocation22], 5
    %161 = sst [smem:[%s160]] 2
    %s162 = scalar_lea.smem [#allocation22], 6
    %163 = sst [smem:[%s162]] 128
    %s164 = scalar_lea.smem [#allocation22], 7
    %165 = sst [smem:[%s164]] 64
    %s166 = scalar_lea.smem [#allocation22], 8
    %167 = sst [smem:[%s166]] 4
    %169 = dma.general %s4, 18432, %s148, [#allocation6], [#allocation21], [#allocation22], %s146, 0
    %s170 = scalar_lea.sflag [#allocation6], 1
    %s172 = sshll.u32 1, 14
    %s173 = sxor.u32 4294967295, %s172
    %s175 = sadd.s32 2, %s139
    %s177 = sshll.u32 7, 26
    %s178 = sxor.u32 4294967295, %s177
    %s179 = sand.u32 0, %s178
    %s180 = sshll.u32 %s175, 26
    %s181 = sor.u32 %s179, %s180
    %s182 = sshll.u32 [#allocation3], 4
    %s183 = int_to_ptr.vmem [resolvable:$true] %s182
    %186 = sst [smem:[#allocation24]] 256
    %s187 = scalar_lea.smem [#allocation24], 1
    %188 = sst [smem:[%s187]] 256
    %s189 = scalar_lea.smem [#allocation24], 2
    %190 = sst [smem:[%s189]] 2
    %s191 = scalar_lea.smem [#allocation24], 3
    %192 = sst [smem:[%s191]] 64
    %s193 = scalar_lea.smem [#allocation24], 4
    %194 = sst [smem:[%s193]] 128
    %s195 = scalar_lea.smem [#allocation24], 5
    %196 = sst [smem:[%s195]] 2
    %s197 = scalar_lea.smem [#allocation24], 6
    %198 = sst [smem:[%s197]] 128
    %s199 = scalar_lea.smem [#allocation24], 7
    %200 = sst [smem:[%s199]] 64
    %s201 = scalar_lea.smem [#allocation24], 8
    %202 = sst [smem:[%s201]] 4
    %204 = dma.general %s7, 36864, %s183, %s170, [#allocation23], [#allocation24], %s181, 0
    %v205 = vlaneseq
    %v206 = vshrl.u32 %v205, 7
    %v207 = vand.u32 %v206, 3
    %vm208 = vcmp.lt.s32.totalorder %v207, 2
    %vm209 = vcmp.ge.s32.totalorder %v207, 2
    %v210 = vand.u32 %v207, 1
    %vm211 = vcmp.eq.s32.totalorder %v210, 0
    %vm212 = vcmp.eq.s32.totalorder %v210, 1
    %v213 = vld [vmem:[%s0] sm:$0xff]
    %v214 = vld [vmem:[%s0 + $0x8] sm:$0xff]
    %v215 = vld [vmem:[#allocation8] sm:$0xff]
    %v216 = vld [vmem:[#allocation8 + $0x8] sm:$0xff]
    %v217 = vld [vmem:[#allocation8 + $0x10] sm:$0xff]
    %v218 = vld [vmem:[#allocation8 + $0x18] sm:$0xff]
    %v219 = vld [vmem:[#allocation8 + $0x20] sm:$0xff]
    %v220 = vld [vmem:[#allocation8 + $0x28] sm:$0xff]
    %v221 = vld [vmem:[#allocation8 + $0x30] sm:$0xff]
    %v222 = vld [vmem:[#allocation8 + $0x38] sm:$0xff]
    %v223 = vld [vmem:[#allocation8 + $0x40] sm:$0xff]
    %v224 = vld [vmem:[#allocation8 + $0x48] sm:$0xff]
    %v225 = vld [vmem:[#allocation8 + $0x50] sm:$0xff]
    %v226 = vld [vmem:[#allocation8 + $0x58] sm:$0xff]
    %v227 = vld [vmem:[#allocation8 + $0x60] sm:$0xff]
    %v228 = vld [vmem:[#allocation8 + $0x68] sm:$0xff]
    %v229 = vld [vmem:[#allocation8 + $0x70] sm:$0xff]
    %v230 = vld [vmem:[#allocation8 + $0x78] sm:$0xff]
    %v231 = vld [vmem:[#allocation8 + $0x80] sm:$0xff]
    %v232 = vld [vmem:[#allocation8 + $0x88] sm:$0xff]
    %v233 = vld [vmem:[#allocation8 + $0x90] sm:$0xff]
    %v234 = vld [vmem:[#allocation8 + $0x98] sm:$0xff]
    %v235 = vld [vmem:[#allocation8 + $0xa0] sm:$0xff]
    %v236 = vld [vmem:[#allocation8 + $0xa8] sm:$0xff]
    %v237 = vld [vmem:[#allocation8 + $0xb0] sm:$0xff]
    %v238 = vld [vmem:[#allocation8 + $0xb8] sm:$0xff]
    %vm239 = vcmask 523264
    %v241 = vsel %vm239, %v214, 0
    %243 = vmatprep.subr.mxu0 0.0
    %244 = vmatpush1.msra.mxu0 %v215
    %245 = vmatprep.subr.mxu0 0.0
    %246 = vmatpush1.msra.mxu0 %v216
    %247 = vmatprep.subr.mxu0 0.0
    %248 = vmatpush1.msra.mxu0 %v217
    %249 = vmatprep.subr.mxu0 0.0
    %250 = vmatpush1.msra.mxu0 %v218
    %251 = vmatprep.subr.mxu0 0.0
    %252 = vmatpush1.msra.mxu0 %v219
    %253 = vmatprep.subr.mxu0 0.0
    %254 = vmatpush1.msra.mxu0 %v220
    %255 = vmatprep.subr.mxu0 0.0
    %256 = vmatpush1.msra.mxu0 %v221
    %257 = vmatprep.subr.mxu0 0.0
    %258 = vmatpush1.msra.mxu0 %v222
    %259 = vmatprep.subr.mxu0 0.0
    %260 = vmatpush1.msra.mxu0 %v223
    %261 = vmatprep.subr.mxu0 0.0
    %262 = vmatpush1.msra.mxu0 %v224
    %263 = vmatprep.subr.mxu0 0.0
    %264 = vmatpush1.msra.mxu0 %v225
    %265 = vmatprep.subr.mxu0 0.0
    %266 = vmatpush1.msra.mxu0 %v226
    %267 = vmatprep.subr.mxu0 0.0
    %268 = vmatpush1.msra.mxu0 %v227
    %269 = vmatprep.subr.mxu0 0.0
    %270 = vmatpush1.msra.mxu0 %v228
    %271 = vmatprep.subr.mxu0 0.0
    %272 = vmatpush1.msra.mxu0 %v229
    %273 = vmatprep.subr.mxu0 0.0
    %274 = vmatpush1.msra.mxu0 %v230
    %275 = vmatprep.subr.mxu0 0.0
    %276 = vmatpush1.msra.mxu0 %v231
    %277 = vmatprep.subr.mxu0 0.0
    %278 = vmatpush1.msra.mxu0 %v232
    %279 = vmatprep.subr.mxu0 0.0
    %280 = vmatpush1.msra.mxu0 %v233
    %281 = vmatprep.subr.mxu0 0.0
    %282 = vmatpush1.msra.mxu0 %v234
    %283 = vmatprep.subr.mxu0 0.0
    %284 = vmatpush1.msra.mxu0 %v235
    %285 = vmatprep.subr.mxu0 0.0
    %286 = vmatpush1.msra.mxu0 %v236
    %287 = vmatprep.subr.mxu0 0.0
    %288 = vmatpush1.msra.mxu0 %v237
    %289 = vmatprep.subr.mxu0 0.0
    %290 = vmatpush1.msra.mxu0 %v238
    %291 = vmatprep.subr.mxu0 0.0
    %292 = vmatpush1.msra.mxu0 0.0
    %293 = vmatprep.subr.mxu0 0.0
    %294 = vmatpush1.msra.mxu0 0.0
    %295 = vmatprep.subr.mxu0 0.0
    %296 = vmatpush1.msra.mxu0 0.0
    %297 = vmatprep.subr.mxu0 0.0
    %298 = vmatpush1.msra.mxu0 0.0
    %299 = vmatprep.subr.mxu0 0.0
    %300 = vmatpush1.msra.mxu0 0.0
    %301 = vmatprep.subr.mxu0 0.0
    %302 = vmatpush1.msra.mxu0 0.0
    %303 = vmatprep.subr.mxu0 0.0
    %304 = vmatpush1.msra.mxu0 0.0
    %305 = vmatprep.subr.mxu0 0.0
    %306 = vmatpush1.msra.mxu0 0.0
    %307 = vmatprep.mubr.f32.mxu0 %v241
    %308 = vmatmul.mubr.f32.gmra.mrb[0].mxu0 %v213
    %v309 = vpop.f32.mrb[0].mxu0
    %v310 = vadd.f32 0.0, %v309
    %v311 = vpop.f32.mrb[0].mxu0
    %312 = vdwg.mxu0
    %v313 = vld [vmem:[#allocation10] sm:$0x1]
    %v314 = vld [vmem:[#allocation12] sm:$0x1]
    %v315 = vrot.slane %v310, 4
    %v316 = vadd.f32 %v310, %v315
    %v317 = vrot.slane %v316, 2
    %v318 = vadd.f32 %v316, %v317
    %v319 = vrot.slane %v318, 1
    %v320 = vadd.f32 %v318, %v319
    %v321 = vrcp.pop 8.0
    %v322 = vmul.f32 %v320, %v321
    %v323 = vsub.f32 %v310, %v322
    %v324 = vmul.f32 %v323, %v323
    %v325 = vrot.slane %v324, 4
    %v326 = vadd.f32 %v324, %v325
    %v327 = vrot.slane %v326, 2
    %v328 = vadd.f32 %v326, %v327
    %v329 = vrot.slane %v328, 1
    %v330 = vadd.f32 %v328, %v329
    %v331 = vmul.f32 %v330, %v321
    %v332 = vadd.f32 %v331, 1e-05
    %v333 = vrsqrt.pop %v332
    %v334 = vmul.f32 %v313, %v333
    %v336 = vlaneseq
    %v337 = vshrl.u32 %v336, 7
    %v338 = vsub.s32 0, %v337
    %v339 = vrot.slane %v334, %v338
    %v341 = vmul.f32 %v323, %v339
    %v343 = vlaneseq
    %v344 = vshrl.u32 %v343, 7
    %v345 = vsub.s32 0, %v344
    %v346 = vrot.slane %v314, %v345
    %v348 = vadd.f32 %v341, %v346
    %vm349 = vcmp.ge.f32.partialorder %v348, 0.0
    %v350 = vmul.f32 %v348, 0.2
    %v351 = vsel %vm349, %v348, %v350
    %352 = vst [vmem:[#allocation4] sm:$0xff] %v351
    %353 = vst [vmem:[#allocation4 + $0x8] sm:$0xff] %v351
    %v354 = vld [vmem:[#allocation4 + $0x5] sm:$0xff]
    %vm355 = vmand %vm209, %vm212
    %v356 = vsel %vm355, 1, 0
    %vm357 = vcmp.eq.s32.totalorder %v356, 1
    %v358 = vsel %vm357, %v354, 0.0
    %v359 = vld [vmem:[#allocation4 + $0x6] sm:$0xff]
    %v360 = vsel %vm209, 1, 0
    %vm361 = vcmp.eq.s32.totalorder %v360, 1
    %v362 = vsel %vm361, %v359, 0.0
    %v363 = vld [vmem:[#allocation4 + $0x7] sm:$0xff]
    %vm364 = vmand %vm209, %vm211
    %v365 = vsel %vm364, 1, 0
    %vm366 = vcmp.eq.s32.totalorder %v365, 1
    %v367 = vsel %vm366, %v363, 0.0
    %v368 = vsel %vm212, 1, 0
    %vm369 = vcmp.eq.s32.totalorder %v368, 1
    %v370 = vsel %vm369, %v363, 0.0
    %v371 = vld [vmem:[#allocation4 + $0x1] sm:$0xff]
    %v372 = vsel %vm211, 1, 0
    %vm373 = vcmp.eq.s32.totalorder %v372, 1
    %v374 = vsel %vm373, %v371, 0.0
    %vm375 = vmand %vm208, %vm212
    %v376 = vsel %vm375, 1, 0
    %vm377 = vcmp.eq.s32.totalorder %v376, 1
    %v378 = vsel %vm377, %v371, 0.0
    %v379 = vld [vmem:[#allocation4 + $0x2] sm:$0xff]
    %v380 = vsel %vm208, 1, 0
    %vm381 = vcmp.eq.s32.totalorder %v380, 1
    %v382 = vsel %vm381, %v379, 0.0
    %v383 = vld [vmem:[#allocation4 + $0x3] sm:$0xff]
    %vm384 = vmand %vm208, %vm211
    %v385 = vsel %vm384, 1, 0
    %vm386 = vcmp.eq.s32.totalorder %v385, 1
    %v387 = vsel %vm386, %v383, 0.0
    %v388 = vpack.c.bf16 %v358, %v358
    %v389 = vpack.c.bf16 %v362, %v362
    %v390 = vpack.c.bf16 %v367, %v367
    %v391 = vpack.c.bf16 %v370, %v370
    %v392 = vpack.c.bf16 %v351, %v351
    %v393 = vpack.c.bf16 %v374, %v374
    %v394 = vpack.c.bf16 %v378, %v378
    %v395 = vpack.c.bf16 %v382, %v382
    %v396 = vpack.c.bf16 %v387, %v387
    %s397 = smul.u32 4, 144
    %s398 = smul.u32 %s397, 2
    %s399 = sshll.u32 %s398, 4
    %400 = dma.done [#allocation6], %s399
    %v401 = vld [vmem:[#allocation2] sm:$0xff]
    %v402 = vld [vmem:[#allocation2 + $0x8] sm:$0xff]
    %v403 = vld [vmem:[#allocation2 + $0x10] sm:$0xff]
    %v404 = vld [vmem:[#allocation2 + $0x18] sm:$0xff]
    %v405 = vld [vmem:[#allocation2 + $0x20] sm:$0xff]
    %v406 = vld [vmem:[#allocation2 + $0x28] sm:$0xff]
    %v407 = vld [vmem:[#allocation2 + $0x30] sm:$0xff]
    %v408 = vld [vmem:[#allocation2 + $0x38] sm:$0xff]
    %v409 = vld [vmem:[#allocation2 + $0x40] sm:$0xff]
    %v410 = vld [vmem:[#allocation2 + $0x48] sm:$0xff]
    %v411 = vld [vmem:[#allocation2 + $0x50] sm:$0xff]
    %v412 = vld [vmem:[#allocation2 + $0x58] sm:$0xff]
    %v413 = vld [vmem:[#allocation2 + $0x60] sm:$0xff]
    %v414 = vld [vmem:[#allocation2 + $0x68] sm:$0xff]
    %v415 = vld [vmem:[#allocation2 + $0x70] sm:$0xff]
    %v416 = vld [vmem:[#allocation2 + $0x78] sm:$0xff]
    %v417 = vld [vmem:[#allocation2 + $0x80] sm:$0xff]
    %v418 = vld [vmem:[#allocation2 + $0x88] sm:$0xff]
    %v419 = vld [vmem:[#allocation2 + $0x90] sm:$0xff]
    %v420 = vld [vmem:[#allocation2 + $0x98] sm:$0xff]
    %v421 = vld [vmem:[#allocation2 + $0xa0] sm:$0xff]
    %v422 = vld [vmem:[#allocation2 + $0xa8] sm:$0xff]
    %v423 = vld [vmem:[#allocation2 + $0xb0] sm:$0xff]
    %v424 = vld [vmem:[#allocation2 + $0xb8] sm:$0xff]
    %v425 = vld [vmem:[#allocation2 + $0xc0] sm:$0xff]
    %v426 = vld [vmem:[#allocation2 + $0xc8] sm:$0xff]
    %v427 = vld [vmem:[#allocation2 + $0xd0] sm:$0xff]
    %v428 = vld [vmem:[#allocation2 + $0xd8] sm:$0xff]
    %v429 = vld [vmem:[#allocation2 + $0xe0] sm:$0xff]
    %v430 = vld [vmem:[#allocation2 + $0xe8] sm:$0xff]
    %v431 = vld [vmem:[#allocation2 + $0xf0] sm:$0xff]
    %v432 = vld [vmem:[#allocation2 + $0xf8] sm:$0xff]
    %v433 = vld [vmem:[#allocation2 + $0x100] sm:$0xff]
    %v434 = vld [vmem:[#allocation2 + $0x108] sm:$0xff]
    %v435 = vld [vmem:[#allocation2 + $0x110] sm:$0xff]
    %v436 = vld [vmem:[#allocation2 + $0x118] sm:$0xff]
    %v437 = vld [vmem:[#allocation2 + $0x120] sm:$0xff]
    %v438 = vld [vmem:[#allocation2 + $0x128] sm:$0xff]
    %v439 = vld [vmem:[#allocation2 + $0x130] sm:$0xff]
    %v440 = vld [vmem:[#allocation2 + $0x138] sm:$0xff]
    %v441 = vld [vmem:[#allocation2 + $0x140] sm:$0xff]
    %v442 = vld [vmem:[#allocation2 + $0x148] sm:$0xff]
    %v443 = vld [vmem:[#allocation2 + $0x150] sm:$0xff]
    %v444 = vld [vmem:[#allocation2 + $0x158] sm:$0xff]
    %v445 = vld [vmem:[#allocation2 + $0x160] sm:$0xff]
    %v446 = vld [vmem:[#allocation2 + $0x168] sm:$0xff]
    %v447 = vld [vmem:[#allocation2 + $0x170] sm:$0xff]
    %v448 = vld [vmem:[#allocation2 + $0x178] sm:$0xff]
    %v449 = vld [vmem:[#allocation2 + $0x180] sm:$0xff]
    %v450 = vld [vmem:[#allocation2 + $0x188] sm:$0xff]
    %v451 = vld [vmem:[#allocation2 + $0x190] sm:$0xff]
    %v452 = vld [vmem:[#allocation2 + $0x198] sm:$0xff]
    %v453 = vld [vmem:[#allocation2 + $0x1a0] sm:$0xff]
    %v454 = vld [vmem:[#allocation2 + $0x1a8] sm:$0xff]
    %v455 = vld [vmem:[#allocation2 + $0x1b0] sm:$0xff]
    %v456 = vld [vmem:[#allocation2 + $0x1b8] sm:$0xff]
    %v457 = vld [vmem:[#allocation2 + $0x1c0] sm:$0xff]
    %v458 = vld [vmem:[#allocation2 + $0x1c8] sm:$0xff]
    %v459 = vld [vmem:[#allocation2 + $0x1d0] sm:$0xff]
    %v460 = vld [vmem:[#allocation2 + $0x1d8] sm:$0xff]
    %v461 = vld [vmem:[#allocation2 + $0x1e0] sm:$0xff]
    %v462 = vld [vmem:[#allocation2 + $0x1e8] sm:$0xff]
    %v463 = vld [vmem:[#allocation2 + $0x1f0] sm:$0xff]
    %v464 = vld [vmem:[#allocation2 + $0x1f8] sm:$0xff]
    %v465 = vld [vmem:[#allocation2 + $0x200] sm:$0xff]
    %v466 = vld [vmem:[#allocation2 + $0x208] sm:$0xff]
    %v467 = vld [vmem:[#allocation2 + $0x210] sm:$0xff]
    %v468 = vld [vmem:[#allocation2 + $0x218] sm:$0xff]
    %v469 = vld [vmem:[#allocation2 + $0x220] sm:$0xff]
    %v470 = vld [vmem:[#allocation2 + $0x228] sm:$0xff]
    %v471 = vld [vmem:[#allocation2 + $0x230] sm:$0xff]
    %v472 = vld [vmem:[#allocation2 + $0x238] sm:$0xff]
    %v473 = vld [vmem:[#allocation2 + $0x240] sm:$0xff]
    %v474 = vld [vmem:[#allocation2 + $0x248] sm:$0xff]
    %v475 = vld [vmem:[#allocation2 + $0x250] sm:$0xff]
    %v476 = vld [vmem:[#allocation2 + $0x258] sm:$0xff]
    %v477 = vld [vmem:[#allocation2 + $0x260] sm:$0xff]
    %v478 = vld [vmem:[#allocation2 + $0x268] sm:$0xff]
    %v479 = vld [vmem:[#allocation2 + $0x270] sm:$0xff]
    %v480 = vld [vmem:[#allocation2 + $0x278] sm:$0xff]
    %v481 = vld [vmem:[#allocation2 + $0x280] sm:$0xff]
    %v482 = vld [vmem:[#allocation2 + $0x288] sm:$0xff]
    %v483 = vld [vmem:[#allocation2 + $0x290] sm:$0xff]
    %v484 = vld [vmem:[#allocation2 + $0x298] sm:$0xff]
    %v485 = vld [vmem:[#allocation2 + $0x2a0] sm:$0xff]
    %v486 = vld [vmem:[#allocation2 + $0x2a8] sm:$0xff]
    %v487 = vld [vmem:[#allocation2 + $0x2b0] sm:$0xff]
    %v488 = vld [vmem:[#allocation2 + $0x2b8] sm:$0xff]
    %v489 = vld [vmem:[#allocation2 + $0x2c0] sm:$0xff]
    %v490 = vld [vmem:[#allocation2 + $0x2c8] sm:$0xff]
    %v491 = vld [vmem:[#allocation2 + $0x2d0] sm:$0xff]
    %v492 = vld [vmem:[#allocation2 + $0x2d8] sm:$0xff]
    %v493 = vld [vmem:[#allocation2 + $0x2e0] sm:$0xff]
    %v494 = vld [vmem:[#allocation2 + $0x2e8] sm:$0xff]
    %v495 = vld [vmem:[#allocation2 + $0x2f0] sm:$0xff]
    %v496 = vld [vmem:[#allocation2 + $0x2f8] sm:$0xff]
    %v497 = vld [vmem:[#allocation2 + $0x300] sm:$0xff]
    %v498 = vld [vmem:[#allocation2 + $0x308] sm:$0xff]
    %v499 = vld [vmem:[#allocation2 + $0x310] sm:$0xff]
    %v500 = vld [vmem:[#allocation2 + $0x318] sm:$0xff]
    %v501 = vld [vmem:[#allocation2 + $0x320] sm:$0xff]
    %v502 = vld [vmem:[#allocation2 + $0x328] sm:$0xff]
    %v503 = vld [vmem:[#allocation2 + $0x330] sm:$0xff]
    %v504 = vld [vmem:[#allocation2 + $0x338] sm:$0xff]
    %v505 = vld [vmem:[#allocation2 + $0x340] sm:$0xff]
    %v506 = vld [vmem:[#allocation2 + $0x348] sm:$0xff]
    %v507 = vld [vmem:[#allocation2 + $0x350] sm:$0xff]
    %v508 = vld [vmem:[#allocation2 + $0x358] sm:$0xff]
    %v509 = vld [vmem:[#allocation2 + $0x360] sm:$0xff]
    %v510 = vld [vmem:[#allocation2 + $0x368] sm:$0xff]
    %v511 = vld [vmem:[#allocation2 + $0x370] sm:$0xff]
    %v512 = vld [vmem:[#allocation2 + $0x378] sm:$0xff]
    %v513 = vld [vmem:[#allocation2 + $0x380] sm:$0xff]
    %v514 = vld [vmem:[#allocation2 + $0x388] sm:$0xff]
    %v515 = vld [vmem:[#allocation2 + $0x390] sm:$0xff]
    %v516 = vld [vmem:[#allocation2 + $0x398] sm:$0xff]
    %v517 = vld [vmem:[#allocation2 + $0x3a0] sm:$0xff]
    %v518 = vld [vmem:[#allocation2 + $0x3a8] sm:$0xff]
    %v519 = vld [vmem:[#allocation2 + $0x3b0] sm:$0xff]
    %v520 = vld [vmem:[#allocation2 + $0x3b8] sm:$0xff]
    %v521 = vld [vmem:[#allocation2 + $0x3c0] sm:$0xff]
    %v522 = vld [vmem:[#allocation2 + $0x3c8] sm:$0xff]
    %v523 = vld [vmem:[#allocation2 + $0x3d0] sm:$0xff]
    %v524 = vld [vmem:[#allocation2 + $0x3d8] sm:$0xff]
    %v525 = vld [vmem:[#allocation2 + $0x3e0] sm:$0xff]
    %v526 = vld [vmem:[#allocation2 + $0x3e8] sm:$0xff]
    %v527 = vld [vmem:[#allocation2 + $0x3f0] sm:$0xff]
    %v528 = vld [vmem:[#allocation2 + $0x3f8] sm:$0xff]
    %v529 = vld [vmem:[#allocation2 + $0x400] sm:$0xff]
    %v530 = vld [vmem:[#allocation2 + $0x408] sm:$0xff]
    %v531 = vld [vmem:[#allocation2 + $0x410] sm:$0xff]
    %v532 = vld [vmem:[#allocation2 + $0x418] sm:$0xff]
    %v533 = vld [vmem:[#allocation2 + $0x420] sm:$0xff]
    %v534 = vld [vmem:[#allocation2 + $0x428] sm:$0xff]
    %v535 = vld [vmem:[#allocation2 + $0x430] sm:$0xff]
    %v536 = vld [vmem:[#allocation2 + $0x438] sm:$0xff]
    %v537 = vld [vmem:[#allocation2 + $0x440] sm:$0xff]
    %v538 = vld [vmem:[#allocation2 + $0x448] sm:$0xff]
    %v539 = vld [vmem:[#allocation2 + $0x450] sm:$0xff]
    %v540 = vld [vmem:[#allocation2 + $0x458] sm:$0xff]
    %v541 = vld [vmem:[#allocation2 + $0x460] sm:$0xff]
    %v542 = vld [vmem:[#allocation2 + $0x468] sm:$0xff]
    %v543 = vld [vmem:[#allocation2 + $0x470] sm:$0xff]
    %v544 = vld [vmem:[#allocation2 + $0x478] sm:$0xff]
    %545 = vmatprep.subr.bf16.mxu0 %v402
    %546 = vmatpush1.bf16.msra.mxu0 %v401
    %547 = vmatprep.subr.bf16.mxu0 %v404
    %548 = vmatpush1.bf16.msra.mxu0 %v403
    %549 = vmatprep.subr.bf16.mxu0 %v406
    %550 = vmatpush1.bf16.msra.mxu0 %v405
    %551 = vmatprep.subr.bf16.mxu0 %v408
    %552 = vmatpush1.bf16.msra.mxu0 %v407
    %553 = vmatprep.subr.bf16.mxu0 %v410
    %554 = vmatpush1.bf16.msra.mxu0 %v409
    %555 = vmatprep.subr.bf16.mxu0 %v412
    %556 = vmatpush1.bf16.msra.mxu0 %v411
    %557 = vmatprep.subr.bf16.mxu0 %v414
    %558 = vmatpush1.bf16.msra.mxu0 %v413
    %559 = vmatprep.subr.bf16.mxu0 %v416
    %560 = vmatpush1.bf16.msra.mxu0 %v415
    %561 = vmatprep.subr.bf16.mxu0 %v418
    %562 = vmatpush1.bf16.msra.mxu0 %v417
    %563 = vmatprep.subr.bf16.mxu0 %v420
    %564 = vmatpush1.bf16.msra.mxu0 %v419
    %565 = vmatprep.subr.bf16.mxu0 %v422
    %566 = vmatpush1.bf16.msra.mxu0 %v421
    %567 = vmatprep.subr.bf16.mxu0 %v424
    %568 = vmatpush1.bf16.msra.mxu0 %v423
    %569 = vmatprep.subr.bf16.mxu0 %v426
    %570 = vmatpush1.bf16.msra.mxu0 %v425
    %571 = vmatprep.subr.bf16.mxu0 %v428
    %572 = vmatpush1.bf16.msra.mxu0 %v427
    %573 = vmatprep.subr.bf16.mxu0 %v430
    %574 = vmatpush1.bf16.msra.mxu0 %v429
    %575 = vmatprep.subr.bf16.mxu0 %v432
    %576 = vmatpush1.bf16.msra.mxu0 %v431
    %577 = vmatprep.mubr.bf16.mxu0 %v389
    %578 = vmatmul.mubr.bf16.gmra.mrb[0].mxu0 %v388
    %v579 = vpop.f32.mrb[0].mxu0
    %v580 = vadd.f32 0.0, %v579
    %v581 = vpop.f32.mrb[0].mxu0
    %v582 = vadd.f32 0.0, %v581
    %v583 = vpop.f32.mrb[0].mxu0
    %v584 = vpop.f32.mrb[0].mxu0
    %585 = vdwg.mxu0
    %586 = vmatprep.subr.bf16.mxu0 %v434
    %587 = vmatpush1.bf16.msra.mxu0 %v433
    %588 = vmatprep.subr.bf16.mxu0 %v436
    %589 = vmatpush1.bf16.msra.mxu0 %v435
    %590 = vmatprep.subr.bf16.mxu0 %v438
    %591 = vmatpush1.bf16.msra.mxu0 %v437
    %592 = vmatprep.subr.bf16.mxu0 %v440
    %593 = vmatpush1.bf16.msra.mxu0 %v439
    %594 = vmatprep.subr.bf16.mxu0 %v442
    %595 = vmatpush1.bf16.msra.mxu0 %v441
    %596 = vmatprep.subr.bf16.mxu0 %v444
    %597 = vmatpush1.bf16.msra.mxu0 %v443
    %598 = vmatprep.subr.bf16.mxu0 %v446
    %599 = vmatpush1.bf16.msra.mxu0 %v445
    %600 = vmatprep.subr.bf16.mxu0 %v448
    %601 = vmatpush1.bf16.msra.mxu0 %v447
    %602 = vmatprep.subr.bf16.mxu0 %v450
    %603 = vmatpush1.bf16.msra.mxu0 %v449
    %604 = vmatprep.subr.bf16.mxu0 %v452
    %605 = vmatpush1.bf16.msra.mxu0 %v451
    %606 = vmatprep.subr.bf16.mxu0 %v454
    %607 = vmatpush1.bf16.msra.mxu0 %v453
    %608 = vmatprep.subr.bf16.mxu0 %v456
    %609 = vmatpush1.bf16.msra.mxu0 %v455
    %610 = vmatprep.subr.bf16.mxu0 %v458
    %611 = vmatpush1.bf16.msra.mxu0 %v457
    %612 = vmatprep.subr.bf16.mxu0 %v460
    %613 = vmatpush1.bf16.msra.mxu0 %v459
    %614 = vmatprep.subr.bf16.mxu0 %v462
    %615 = vmatpush1.bf16.msra.mxu0 %v461
    %616 = vmatprep.subr.bf16.mxu0 %v464
    %617 = vmatpush1.bf16.msra.mxu0 %v463
    %618 = vmatprep.mubr.bf16.mxu0 %v391
    %619 = vmatmul.mubr.bf16.gmra.mrb[0].mxu0 %v390
    %v620 = vpop.f32.mrb[0].mxu0
    %v621 = vadd.f32 %v580, %v620
    %v622 = vpop.f32.mrb[0].mxu0
    %v623 = vadd.f32 %v582, %v622
    %v624 = vpop.f32.mrb[0].mxu0
    %v625 = vpop.f32.mrb[0].mxu0
    %626 = vdwg.mxu0
    %627 = vmatprep.subr.bf16.mxu0 %v466
    %628 = vmatpush1.bf16.msra.mxu0 %v465
    %629 = vmatprep.subr.bf16.mxu0 %v468
    %630 = vmatpush1.bf16.msra.mxu0 %v467
    %631 = vmatprep.subr.bf16.mxu0 %v470
    %632 = vmatpush1.bf16.msra.mxu0 %v469
    %633 = vmatprep.subr.bf16.mxu0 %v472
    %634 = vmatpush1.bf16.msra.mxu0 %v471
    %635 = vmatprep.subr.bf16.mxu0 %v474
    %636 = vmatpush1.bf16.msra.mxu0 %v473
    %637 = vmatprep.subr.bf16.mxu0 %v476
    %638 = vmatpush1.bf16.msra.mxu0 %v475
    %639 = vmatprep.subr.bf16.mxu0 %v478
    %640 = vmatpush1.bf16.msra.mxu0 %v477
    %641 = vmatprep.subr.bf16.mxu0 %v480
    %642 = vmatpush1.bf16.msra.mxu0 %v479
    %643 = vmatprep.subr.bf16.mxu0 %v482
    %644 = vmatpush1.bf16.msra.mxu0 %v481
    %645 = vmatprep.subr.bf16.mxu0 %v484
    %646 = vmatpush1.bf16.msra.mxu0 %v483
    %647 = vmatprep.subr.bf16.mxu0 %v486
    %648 = vmatpush1.bf16.msra.mxu0 %v485
    %649 = vmatprep.subr.bf16.mxu0 %v488
    %650 = vmatpush1.bf16.msra.mxu0 %v487
    %651 = vmatprep.subr.bf16.mxu0 %v490
    %652 = vmatpush1.bf16.msra.mxu0 %v489
    %653 = vmatprep.subr.bf16.mxu0 %v492
    %654 = vmatpush1.bf16.msra.mxu0 %v491
    %655 = vmatprep.subr.bf16.mxu0 %v494
    %656 = vmatpush1.bf16.msra.mxu0 %v493
    %657 = vmatprep.subr.bf16.mxu0 %v496
    %658 = vmatpush1.bf16.msra.mxu0 %v495
    %659 = vmatprep.mubr.bf16.mxu0 %v393
    %660 = vmatmul.mubr.bf16.gmra.mrb[0].mxu0 %v392
    %v661 = vpop.f32.mrb[0].mxu0
    %v662 = vadd.f32 %v621, %v661
    %v663 = vpop.f32.mrb[0].mxu0
    %v664 = vadd.f32 %v623, %v663
    %v665 = vpop.f32.mrb[0].mxu0
    %v666 = vpop.f32.mrb[0].mxu0
    %667 = vdwg.mxu0
    %668 = vmatprep.subr.bf16.mxu0 %v498
    %669 = vmatpush1.bf16.msra.mxu0 %v497
    %670 = vmatprep.subr.bf16.mxu0 %v500
    %671 = vmatpush1.bf16.msra.mxu0 %v499
    %672 = vmatprep.subr.bf16.mxu0 %v502
    %673 = vmatpush1.bf16.msra.mxu0 %v501
    %674 = vmatprep.subr.bf16.mxu0 %v504
    %675 = vmatpush1.bf16.msra.mxu0 %v503
    %676 = vmatprep.subr.bf16.mxu0 %v506
    %677 = vmatpush1.bf16.msra.mxu0 %v505
    %678 = vmatprep.subr.bf16.mxu0 %v508
    %679 = vmatpush1.bf16.msra.mxu0 %v507
    %680 = vmatprep.subr.bf16.mxu0 %v510
    %681 = vmatpush1.bf16.msra.mxu0 %v509
    %682 = vmatprep.subr.bf16.mxu0 %v512
    %683 = vmatpush1.bf16.msra.mxu0 %v511
    %684 = vmatprep.subr.bf16.mxu0 %v514
    %685 = vmatpush1.bf16.msra.mxu0 %v513
    %686 = vmatprep.subr.bf16.mxu0 %v516
    %687 = vmatpush1.bf16.msra.mxu0 %v515
    %688 = vmatprep.subr.bf16.mxu0 %v518
    %689 = vmatpush1.bf16.msra.mxu0 %v517
    %690 = vmatprep.subr.bf16.mxu0 %v520
    %691 = vmatpush1.bf16.msra.mxu0 %v519
    %692 = vmatprep.subr.bf16.mxu0 %v522
    %693 = vmatpush1.bf16.msra.mxu0 %v521
    %694 = vmatprep.subr.bf16.mxu0 %v524
    %695 = vmatpush1.bf16.msra.mxu0 %v523
    %696 = vmatprep.subr.bf16.mxu0 %v526
    %697 = vmatpush1.bf16.msra.mxu0 %v525
    %698 = vmatprep.subr.bf16.mxu0 %v528
    %699 = vmatpush1.bf16.msra.mxu0 %v527
    %700 = vmatprep.mubr.bf16.mxu0 %v395
    %701 = vmatmul.mubr.bf16.gmra.mrb[0].mxu0 %v394
    %v702 = vpop.f32.mrb[0].mxu0
    %v703 = vadd.f32 %v662, %v702
    %v704 = vpop.f32.mrb[0].mxu0
    %v705 = vadd.f32 %v664, %v704
    %v706 = vpop.f32.mrb[0].mxu0
    %v707 = vpop.f32.mrb[0].mxu0
    %708 = vdwg.mxu0
    %709 = vmatprep.subr.bf16.mxu0 %v530
    %710 = vmatpush1.bf16.msra.mxu0 %v529
    %711 = vmatprep.subr.bf16.mxu0 %v532
    %712 = vmatpush1.bf16.msra.mxu0 %v531
    %713 = vmatprep.subr.bf16.mxu0 %v534
    %714 = vmatpush1.bf16.msra.mxu0 %v533
    %715 = vmatprep.subr.bf16.mxu0 %v536
    %716 = vmatpush1.bf16.msra.mxu0 %v535
    %717 = vmatprep.subr.bf16.mxu0 %v538
    %718 = vmatpush1.bf16.msra.mxu0 %v537
    %719 = vmatprep.subr.bf16.mxu0 %v540
    %720 = vmatpush1.bf16.msra.mxu0 %v539
    %721 = vmatprep.subr.bf16.mxu0 %v542
    %722 = vmatpush1.bf16.msra.mxu0 %v541
    %723 = vmatprep.subr.bf16.mxu0 %v544
    %724 = vmatpush1.bf16.msra.mxu0 %v543
    %725 = vmatprep.subr.bf16.mxu0 0
    %726 = vmatpush1.bf16.msra.mxu0 0
    %727 = vmatprep.subr.bf16.mxu0 0
    %728 = vmatpush1.bf16.msra.mxu0 0
    %729 = vmatprep.subr.bf16.mxu0 0
    %730 = vmatpush1.bf16.msra.mxu0 0
    %731 = vmatprep.subr.bf16.mxu0 0
    %732 = vmatpush1.bf16.msra.mxu0 0
    %733 = vmatprep.subr.bf16.mxu0 0
    %734 = vmatpush1.bf16.msra.mxu0 0
    %735 = vmatprep.subr.bf16.mxu0 0
    %736 = vmatpush1.bf16.msra.mxu0 0
    %737 = vmatprep.subr.bf16.mxu0 0
    %738 = vmatpush1.bf16.msra.mxu0 0
    %739 = vmatprep.subr.bf16.mxu0 0
    %740 = vmatpush1.bf16.msra.mxu0 0
    %741 = vmatprep.mubr.bf16.mxu0 0
    %742 = vmatmul.mubr.bf16.gmra.mrb[0].mxu0 %v396
    %v743 = vpop.f32.mrb[0].mxu0
    %v744 = vadd.f32 %v703, %v743
    %v745 = vpop.f32.mrb[0].mxu0
    %v746 = vadd.f32 %v705, %v745
    %v747 = vpop.f32.mrb[0].mxu0
    %v748 = vpop.f32.mrb[0].mxu0
    %749 = vdwg.mxu0
    %v750 = vld [vmem:[#allocation13] sm:$0x3]
    %v751 = vld [vmem:[#allocation15] sm:$0x3]
    %v752 = vrot.slane %v744, 4
    %v753 = vadd.f32 %v744, %v752
    %v754 = vrot.slane %v753, 2
    %v755 = vadd.f32 %v753, %v754
    %v756 = vrot.slane %v755, 1
    %v757 = vadd.f32 %v755, %v756
    %v758 = vrot.slane %v746, 4
    %v759 = vadd.f32 %v746, %v758
    %v760 = vrot.slane %v759, 2
    %v761 = vadd.f32 %v759, %v760
    %v762 = vrot.slane %v761, 1
    %v763 = vadd.f32 %v761, %v762
    %v764 = vmul.f32 %v757, %v321
    %v765 = vmul.f32 %v763, %v321
    %v766 = vsub.f32 %v744, %v764
    %v767 = vsub.f32 %v746, %v765
    %v768 = vmul.f32 %v766, %v766
    %v769 = vmul.f32 %v767, %v767
    %v770 = vrot.slane %v768, 4
    %v771 = vadd.f32 %v768, %v770
    %v772 = vrot.slane %v771, 2
    %v773 = vadd.f32 %v771, %v772
    %v774 = vrot.slane %v773, 1
    %v775 = vadd.f32 %v773, %v774
    %v776 = vrot.slane %v769, 4
    %v777 = vadd.f32 %v769, %v776
    %v778 = vrot.slane %v777, 2
    %v779 = vadd.f32 %v777, %v778
    %v780 = vrot.slane %v779, 1
    %v781 = vadd.f32 %v779, %v780
    %v782 = vmul.f32 %v775, %v321
    %v783 = vmul.f32 %v781, %v321
    %v784 = vadd.f32 %v782, 1e-05
    %v785 = vadd.f32 %v783, 1e-05
    %v786 = vrsqrt.pop %v784
    %v787 = vrsqrt.pop %v785
    %v790 = vcombine.low %v786, %v787
    %v792 = vunpack.c.l.s4 1966171168
    %v793 = vunpack.c.0.s8 %v792
    %v794 = vlaneseq
    %v795 = vshrl.u32 %v794, 7
    %v796 = vsub.s32 %v793, %v795
    %v797 = vrot.slane %v790, %v796
    %v799 = vunpack.c.l.s4 1966171168
    %v800 = vunpack.c.0.s8 %v799
    %v801 = vlaneseq
    %v802 = vshrl.u32 %v801, 7
    %v803 = vsub.s32 %v800, %v802
    %v804 = vrot.slane %v797, %v803
    %v806 = vmul.f32 %v750, %v804
    %v808 = vlaneseq
    %v809 = vshrl.u32 %v808, 7
    %v810 = vsub.s32 0, %v809
    %v811 = vrot.slane %v806, %v810
    %v812 = vlaneseq
    %v813 = vshrl.u32 %v812, 7
    %v814 = vsub.s32 1, %v813
    %v815 = vrot.slane %v806, %v814
    %v818 = vmul.f32 %v766, %v811
    %v819 = vmul.f32 %v767, %v815
    %v821 = vlaneseq
    %v822 = vshrl.u32 %v821, 7
    %v823 = vsub.s32 0, %v822
    %v824 = vrot.slane %v751, %v823
    %v825 = vlaneseq
    %v826 = vshrl.u32 %v825, 7
    %v827 = vsub.s32 1, %v826
    %v828 = vrot.slane %v751, %v827
    %v831 = vadd.f32 %v818, %v824
    %v832 = vadd.f32 %v819, %v828
    %vm833 = vcmp.ge.f32.partialorder %v831, 0.0
    %vm834 = vcmp.ge.f32.partialorder %v832, 0.0
    %v835 = vmul.f32 %v831, 0.2
    %v836 = vmul.f32 %v832, 0.2
    %v837 = vsel %vm833, %v831, %v835
    %v838 = vsel %vm834, %v832, %v836
    %839 = vst [vmem:[#allocation5] sm:$0xff] %v837
    %840 = vst [vmem:[#allocation5 + $0x8] sm:$0xff] %v838
    %841 = vst [vmem:[#allocation5 + $0x10] sm:$0xff] %v837
    %842 = vst [vmem:[#allocation5 + $0x18] sm:$0xff] %v838
    %v843 = vld [vmem:[#allocation5] sm:$0xe0]
    %v844 = vld [vmem:[#allocation5 + $0x8] sm:$0xe0]
    %v845 = vld [vmem:[#allocation5 + $0x10] sm:$0x1f]
    %v846 = vld [vmem:[#allocation5 + $0x18] sm:$0x1f]
    %vm851 = vcmask 1042432
    %v852 = vrot.slane %v843, 5
    %v853 = vrot.slane %v845, 5
    %v854 = vsel %vm851, %v852, %v853
    %v855 = vrot.slane %v844, 5
    %v856 = vrot.slane %v846, 5
    %v857 = vsel %vm851, %v855, %v856
    %v860 = vsel %vm357, %v854, 0.0
    %v861 = vsel %vm357, %v857, 0.0
    %v862 = vld [vmem:[#allocation5] sm:$0xc0]
    %v863 = vld [vmem:[#allocation5 + $0x8] sm:$0xc0]
    %v864 = vld [vmem:[#allocation5 + $0x10] sm:$0x3f]
    %v865 = vld [vmem:[#allocation5 + $0x18] sm:$0x3f]
    %vm870 = vcmask 1041408
    %v871 = vrot.slane %v862, 6
    %v872 = vrot.slane %v864, 6
    %v873 = vsel %vm870, %v871, %v872
    %v874 = vrot.slane %v863, 6
    %v875 = vrot.slane %v865, 6
    %v876 = vsel %vm870, %v874, %v875
    %v879 = vsel %vm361, %v873, 0.0
    %v880 = vsel %vm361, %v876, 0.0
    %v881 = vld [vmem:[#allocation5] sm:$0x80]
    %v882 = vld [vmem:[#allocation5 + $0x8] sm:$0x80]
    %v883 = vld [vmem:[#allocation5 + $0x10] sm:$0x7f]
    %v884 = vld [vmem:[#allocation5 + $0x18] sm:$0x7f]
    %vm889 = vcmask 1040384
    %v890 = vrot.slane %v881, 7
    %v891 = vrot.slane %v883, 7
    %v892 = vsel %vm889, %v890, %v891
    %v893 = vrot.slane %v882, 7
    %v894 = vrot.slane %v884, 7
    %v895 = vsel %vm889, %v893, %v894
    %v898 = vsel %vm366, %v892, 0.0
    %v899 = vsel %vm366, %v895, 0.0
    %v900 = vsel %vm369, %v892, 0.0
    %v901 = vsel %vm369, %v895, 0.0
    %v902 = vld [vmem:[#allocation5] sm:$0xfe]
    %v903 = vld [vmem:[#allocation5 + $0x8] sm:$0xfe]
    %v904 = vld [vmem:[#allocation5 + $0x10] sm:$0x1]
    %v905 = vld [vmem:[#allocation5 + $0x18] sm:$0x1]
    %vm910 = vcmask 1046528
    %v911 = vrot.slane %v902, 1
    %v912 = vrot.slane %v904, 1
    %v913 = vsel %vm910, %v911, %v912
    %v914 = vrot.slane %v903, 1
    %v915 = vrot.slane %v905, 1
    %v916 = vsel %vm910, %v914, %v915
    %v919 = vsel %vm373, %v913, 0.0
    %v920 = vsel %vm373, %v916, 0.0
    %v921 = vsel %vm377, %v913, 0.0
    %v922 = vsel %vm377, %v916, 0.0
    %v923 = vld [vmem:[#allocation5] sm:$0xfc]
    %v924 = vld [vmem:[#allocation5 + $0x8] sm:$0xfc]
    %v925 = vld [vmem:[#allocation5 + $0x10] sm:$0x3]
    %v926 = vld [vmem:[#allocation5 + $0x18] sm:$0x3]
    %vm931 = vcmask 1045504
    %v932 = vrot.slane %v923, 2
    %v933 = vrot.slane %v925, 2
    %v934 = vsel %vm931, %v932, %v933
    %v935 = vrot.slane %v924, 2
    %v936 = vrot.slane %v926, 2
    %v937 = vsel %vm931, %v935, %v936
    %v940 = vsel %vm381, %v934, 0.0
    %v941 = vsel %vm381, %v937, 0.0
    %v942 = vld [vmem:[#allocation5] sm:$0xf8]
    %v943 = vld [vmem:[#allocation5 + $0x8] sm:$0xf8]
    %v944 = vld [vmem:[#allocation5 + $0x10] sm:$0x7]
    %v945 = vld [vmem:[#allocation5 + $0x18] sm:$0x7]
    %vm950 = vcmask 1044480
    %v951 = vrot.slane %v942, 3
    %v952 = vrot.slane %v944, 3
    %v953 = vsel %vm950, %v951, %v952
    %v954 = vrot.slane %v943, 3
    %v955 = vrot.slane %v945, 3
    %v956 = vsel %vm950, %v954, %v955
    %v959 = vsel %vm386, %v953, 0.0
    %v960 = vsel %vm386, %v956, 0.0
    %v961 = vpack.c.bf16 %v860, %v860
    %v962 = vpack.c.bf16 %v861, %v861
    %v963 = vpack.c.bf16 %v879, %v879
    %v964 = vpack.c.bf16 %v880, %v880
    %v965 = vpack.c.bf16 %v898, %v898
    %v966 = vpack.c.bf16 %v899, %v899
    %v967 = vpack.c.bf16 %v900, %v900
    %v968 = vpack.c.bf16 %v901, %v901
    %v969 = vpack.c.bf16 %v837, %v837
    %v970 = vpack.c.bf16 %v838, %v838
    %v971 = vpack.c.bf16 %v919, %v919
    %v972 = vpack.c.bf16 %v920, %v920
    %v973 = vpack.c.bf16 %v921, %v921
    %v974 = vpack.c.bf16 %v922, %v922
    %v975 = vpack.c.bf16 %v940, %v940
    %v976 = vpack.c.bf16 %v941, %v941
    %v977 = vpack.c.bf16 %v959, %v959
    %v978 = vpack.c.bf16 %v960, %v960
    %s979 = smul.u32 4, 288
    %s980 = smul.u32 %s979, 2
    %s981 = sshll.u32 %s980, 4
    %982 = dma.done %s170, %s981
    %v983 = vld [vmem:[#allocation3] sm:$0xff]
    %v984 = vld [vmem:[#allocation3 + $0x8] sm:$0xff]
    %v985 = vld [vmem:[#allocation3 + $0x10] sm:$0xff]
    %v986 = vld [vmem:[#allocation3 + $0x18] sm:$0xff]
    %v987 = vld [vmem:[#allocation3 + $0x20] sm:$0xff]
    %v988 = vld [vmem:[#allocation3 + $0x28] sm:$0xff]
    %v989 = vld [vmem:[#allocation3 + $0x30] sm:$0xff]
    %v990 = vld [vmem:[#allocation3 + $0x38] sm:$0xff]
    %v991 = vld [vmem:[#allocation3 + $0x40] sm:$0xff]
    %v992 = vld [vmem:[#allocation3 + $0x48] sm:$0xff]
    %v993 = vld [vmem:[#allocation3 + $0x50] sm:$0xff]
    %v994 = vld [vmem:[#allocation3 + $0x58] sm:$0xff]
    %v995 = vld [vmem:[#allocation3 + $0x60] sm:$0xff]
    %v996 = vld [vmem:[#allocation3 + $0x68] sm:$0xff]
    %v997 = vld [vmem:[#allocation3 + $0x70] sm:$0xff]
    %v998 = vld [vmem:[#allocation3 + $0x78] sm:$0xff]
    %v999 = vld [vmem:[#allocation3 + $0x80] sm:$0xff]
    %v1000 = vld [vmem:[#allocation3 + $0x88] sm:$0xff]
    %v1001 = vld [vmem:[#allocation3 + $0x90] sm:$0xff]
    %v1002 = vld [vmem:[#allocation3 + $0x98] sm:$0xff]
    %v1003 = vld [vmem:[#allocation3 + $0xa0] sm:$0xff]
    %v1004 = vld [vmem:[#allocation3 + $0xa8] sm:$0xff]
    %v1005 = vld [vmem:[#allocation3 + $0xb0] sm:$0xff]
    %v1006 = vld [vmem:[#allocation3 + $0xb8] sm:$0xff]
    %v1007 = vld [vmem:[#allocation3 + $0xc0] sm:$0xff]
    %v1008 = vld [vmem:[#allocation3 + $0xc8] sm:$0xff]
    %v1009 = vld [vmem:[#allocation3 + $0xd0] sm:$0xff]
    %v1010 = vld [vmem:[#allocation3 + $0xd8] sm:$0xff]
    %v1011 = vld [vmem:[#allocation3 + $0xe0] sm:$0xff]
    %v1012 = vld [vmem:[#allocation3 + $0xe8] sm:$0xff]
    %v1013 = vld [vmem:[#allocation3 + $0xf0] sm:$0xff]
    %v1014 = vld [vmem:[#allocation3 + $0xf8] sm:$0xff]
    %v1015 = vld [vmem:[#allocation3 + $0x100] sm:$0xff]
    %v1016 = vld [vmem:[#allocation3 + $0x108] sm:$0xff]
    %v1017 = vld [vmem:[#allocation3 + $0x110] sm:$0xff]
    %v1018 = vld [vmem:[#allocation3 + $0x118] sm:$0xff]
    %v1019 = vld [vmem:[#allocation3 + $0x120] sm:$0xff]
    %v1020 = vld [vmem:[#allocation3 + $0x128] sm:$0xff]
    %v1021 = vld [vmem:[#allocation3 + $0x130] sm:$0xff]
    %v1022 = vld [vmem:[#allocation3 + $0x138] sm:$0xff]
    %v1023 = vld [vmem:[#allocation3 + $0x140] sm:$0xff]
    %v1024 = vld [vmem:[#allocation3 + $0x148] sm:$0xff]
    %v1025 = vld [vmem:[#allocation3 + $0x150] sm:$0xff]
    %v1026 = vld [vmem:[#allocation3 + $0x158] sm:$0xff]
    %v1027 = vld [vmem:[#allocation3 + $0x160] sm:$0xff]
    %v1028 = vld [vmem:[#allocation3 + $0x168] sm:$0xff]
    %v1029 = vld [vmem:[#allocation3 + $0x170] sm:$0xff]
    %v1030 = vld [vmem:[#allocation3 + $0x178] sm:$0xff]
    %v1031 = vld [vmem:[#allocation3 + $0x180] sm:$0xff]
    %v1032 = vld [vmem:[#allocation3 + $0x188] sm:$0xff]
    %v1033 = vld [vmem:[#allocation3 + $0x190] sm:$0xff]
    %v1034 = vld [vmem:[#allocation3 + $0x198] sm:$0xff]
    %v1035 = vld [vmem:[#allocation3 + $0x1a0] sm:$0xff]
    %v1036 = vld [vmem:[#allocation3 + $0x1a8] sm:$0xff]
    %v1037 = vld [vmem:[#allocation3 + $0x1b0] sm:$0xff]
    %v1038 = vld [vmem:[#allocation3 + $0x1b8] sm:$0xff]
    %v1039 = vld [vmem:[#allocation3 + $0x1c0] sm:$0xff]
    %v1040 = vld [vmem:[#allocation3 + $0x1c8] sm:$0xff]
    %v1041 = vld [vmem:[#allocation3 + $0x1d0] sm:$0xff]
    %v1042 = vld [vmem:[#allocation3 + $0x1d8] sm:$0xff]
    %v1043 = vld [vmem:[#allocation3 + $0x1e0] sm:$0xff]
    %v1044 = vld [vmem:[#allocation3 + $0x1e8] sm:$0xff]
    %v1045 = vld [vmem:[#allocation3 + $0x1f0] sm:$0xff]
    %v1046 = vld [vmem:[#allocation3 + $0x1f8] sm:$0xff]
    %v1047 = vld [vmem:[#allocation3 + $0x200] sm:$0xff]
    %v1048 = vld [vmem:[#allocation3 + $0x208] sm:$0xff]
    %v1049 = vld [vmem:[#allocation3 + $0x210] sm:$0xff]
    %v1050 = vld [vmem:[#allocation3 + $0x218] sm:$0xff]
    %v1051 = vld [vmem:[#allocation3 + $0x220] sm:$0xff]
    %v1052 = vld [vmem:[#allocation3 + $0x228] sm:$0xff]
    %v1053 = vld [vmem:[#allocation3 + $0x230] sm:$0xff]
    %v1054 = vld [vmem:[#allocation3 + $0x238] sm:$0xff]
    %v1055 = vld [vmem:[#allocation3 + $0x240] sm:$0xff]
    %v1056 = vld [vmem:[#allocation3 + $0x248] sm:$0xff]
    %v1057 = vld [vmem:[#allocation3 + $0x250] sm:$0xff]
    %v1058 = vld [vmem:[#allocation3 + $0x258] sm:$0xff]
    %v1059 = vld [vmem:[#allocation3 + $0x260] sm:$0xff]
    %v1060 = vld [vmem:[#allocation3 + $0x268] sm:$0xff]
    %v1061 = vld [vmem:[#allocation3 + $0x270] sm:$0xff]
    %v1062 = vld [vmem:[#allocation3 + $0x278] sm:$0xff]
    %v1063 = vld [vmem:[#allocation3 + $0x280] sm:$0xff]
    %v1064 = vld [vmem:[#allocation3 + $0x288] sm:$0xff]
    %v1065 = vld [vmem:[#allocation3 + $0x290] sm:$0xff]
    %v1066 = vld [vmem:[#allocation3 + $0x298] sm:$0xff]
    %v1067 = vld [vmem:[#allocation3 + $0x2a0] sm:$0xff]
    %v1068 = vld [vmem:[#allocation3 + $0x2a8] sm:$0xff]
    %v1069 = vld [vmem:[#allocation3 + $0x2b0] sm:$0xff]
    %v1070 = vld [vmem:[#allocation3 + $0x2b8] sm:$0xff]
    %v1071 = vld [vmem:[#allocation3 + $0x2c0] sm:$0xff]
    %v1072 = vld [vmem:[#allocation3 + $0x2c8] sm:$0xff]
    %v1073 = vld [vmem:[#allocation3 + $0x2d0] sm:$0xff]
    %v1074 = vld [vmem:[#allocation3 + $0x2d8] sm:$0xff]
    %v1075 = vld [vmem:[#allocation3 + $0x2e0] sm:$0xff]
    %v1076 = vld [vmem:[#allocation3 + $0x2e8] sm:$0xff]
    %v1077 = vld [vmem:[#allocation3 + $0x2f0] sm:$0xff]
    %v1078 = vld [vmem:[#allocation3 + $0x2f8] sm:$0xff]
    %v1079 = vld [vmem:[#allocation3 + $0x300] sm:$0xff]
    %v1080 = vld [vmem:[#allocation3 + $0x308] sm:$0xff]
    %v1081 = vld [vmem:[#allocation3 + $0x310] sm:$0xff]
    %v1082 = vld [vmem:[#allocation3 + $0x318] sm:$0xff]
    %v1083 = vld [vmem:[#allocation3 + $0x320] sm:$0xff]
    %v1084 = vld [vmem:[#allocation3 + $0x328] sm:$0xff]
    %v1085 = vld [vmem:[#allocation3 + $0x330] sm:$0xff]
    %v1086 = vld [vmem:[#allocation3 + $0x338] sm:$0xff]
    %v1087 = vld [vmem:[#allocation3 + $0x340] sm:$0xff]
    %v1088 = vld [vmem:[#allocation3 + $0x348] sm:$0xff]
    %v1089 = vld [vmem:[#allocation3 + $0x350] sm:$0xff]
    %v1090 = vld [vmem:[#allocation3 + $0x358] sm:$0xff]
    %v1091 = vld [vmem:[#allocation3 + $0x360] sm:$0xff]
    %v1092 = vld [vmem:[#allocation3 + $0x368] sm:$0xff]
    %v1093 = vld [vmem:[#allocation3 + $0x370] sm:$0xff]
    %v1094 = vld [vmem:[#allocation3 + $0x378] sm:$0xff]
    %v1095 = vld [vmem:[#allocation3 + $0x380] sm:$0xff]
    %v1096 = vld [vmem:[#allocation3 + $0x388] sm:$0xff]
    %v1097 = vld [vmem:[#allocation3 + $0x390] sm:$0xff]
    %v1098 = vld [vmem:[#allocation3 + $0x398] sm:$0xff]
    %v1099 = vld [vmem:[#allocation3 + $0x3a0] sm:$0xff]
    %v1100 = vld [vmem:[#allocation3 + $0x3a8] sm:$0xff]
    %v1101 = vld [vmem:[#allocation3 + $0x3b0] sm:$0xff]
    %v1102 = vld [vmem:[#allocation3 + $0x3b8] sm:$0xff]
    %v1103 = vld [vmem:[#allocation3 + $0x3c0] sm:$0xff]
    %v1104 = vld [vmem:[#allocation3 + $0x3c8] sm:$0xff]
    %v1105 = vld [vmem:[#allocation3 + $0x3d0] sm:$0xff]
    %v1106 = vld [vmem:[#allocation3 + $0x3d8] sm:$0xff]
    %v1107 = vld [vmem:[#allocation3 + $0x3e0] sm:$0xff]
    %v1108 = vld [vmem:[#allocation3 + $0x3e8] sm:$0xff]
    %v1109 = vld [vmem:[#allocation3 + $0x3f0] sm:$0xff]
    %v1110 = vld [vmem:[#allocation3 + $0x3f8] sm:$0xff]
    %v1111 = vld [vmem:[#allocation3 + $0x400] sm:$0xff]
    %v1112 = vld [vmem:[#allocation3 + $0x408] sm:$0xff]
    %v1113 = vld [vmem:[#allocation3 + $0x410] sm:$0xff]
    %v1114 = vld [vmem:[#allocation3 + $0x418] sm:$0xff]
    %v1115 = vld [vmem:[#allocation3 + $0x420] sm:$0xff]
    %v1116 = vld [vmem:[#allocation3 + $0x428] sm:$0xff]
    %v1117 = vld [vmem:[#allocation3 + $0x430] sm:$0xff]
    %v1118 = vld [vmem:[#allocation3 + $0x438] sm:$0xff]
    %v1119 = vld [vmem:[#allocation3 + $0x440] sm:$0xff]
    %v1120 = vld [vmem:[#allocation3 + $0x448] sm:$0xff]
    %v1121 = vld [vmem:[#allocation3 + $0x450] sm:$0xff]
    %v1122 = vld [vmem:[#allocation3 + $0x458] sm:$0xff]
    %v1123 = vld [vmem:[#allocation3 + $0x460] sm:$0xff]
    %v1124 = vld [vmem:[#allocation3 + $0x468] sm:$0xff]
    %v1125 = vld [vmem:[#allocation3 + $0x470] sm:$0xff]
    %v1126 = vld [vmem:[#allocation3 + $0x478] sm:$0xff]
    %v1127 = vld [vmem:[#allocation3 + $0x480] sm:$0xff]
    %v1128 = vld [vmem:[#allocation3 + $0x488] sm:$0xff]
    %v1129 = vld [vmem:[#allocation3 + $0x490] sm:$0xff]
    %v1130 = vld [vmem:[#allocation3 + $0x498] sm:$0xff]
    %v1131 = vld [vmem:[#allocation3 + $0x4a0] sm:$0xff]
    %v1132 = vld [vmem:[#allocation3 + $0x4a8] sm:$0xff]
    %v1133 = vld [vmem:[#allocation3 + $0x4b0] sm:$0xff]
    %v1134 = vld [vmem:[#allocation3 + $0x4b8] sm:$0xff]
    %v1135 = vld [vmem:[#allocation3 + $0x4c0] sm:$0xff]
    %v1136 = vld [vmem:[#allocation3 + $0x4c8] sm:$0xff]
    %v1137 = vld [vmem:[#allocation3 + $0x4d0] sm:$0xff]
    %v1138 = vld [vmem:[#allocation3 + $0x4d8] sm:$0xff]
    %v1139 = vld [vmem:[#allocation3 + $0x4e0] sm:$0xff]
    %v1140 = vld [vmem:[#allocation3 + $0x4e8] sm:$0xff]
    %v1141 = vld [vmem:[#allocation3 + $0x4f0] sm:$0xff]
    %v1142 = vld [vmem:[#allocation3 + $0x4f8] sm:$0xff]
    %v1143 = vld [vmem:[#allocation3 + $0x500] sm:$0xff]
    %v1144 = vld [vmem:[#allocation3 + $0x508] sm:$0xff]
    %v1145 = vld [vmem:[#allocation3 + $0x510] sm:$0xff]
    %v1146 = vld [vmem:[#allocation3 + $0x518] sm:$0xff]
    %v1147 = vld [vmem:[#allocation3 + $0x520] sm:$0xff]
    %v1148 = vld [vmem:[#allocation3 + $0x528] sm:$0xff]
    %v1149 = vld [vmem:[#allocation3 + $0x530] sm:$0xff]
    %v1150 = vld [vmem:[#allocation3 + $0x538] sm:$0xff]
    %v1151 = vld [vmem:[#allocation3 + $0x540] sm:$0xff]
    %v1152 = vld [vmem:[#allocation3 + $0x548] sm:$0xff]
    %v1153 = vld [vmem:[#allocation3 + $0x550] sm:$0xff]
    %v1154 = vld [vmem:[#allocation3 + $0x558] sm:$0xff]
    %v1155 = vld [vmem:[#allocation3 + $0x560] sm:$0xff]
    %v1156 = vld [vmem:[#allocation3 + $0x568] sm:$0xff]
    %v1157 = vld [vmem:[#allocation3 + $0x570] sm:$0xff]
    %v1158 = vld [vmem:[#allocation3 + $0x578] sm:$0xff]
    %v1159 = vld [vmem:[#allocation3 + $0x580] sm:$0xff]
    %v1160 = vld [vmem:[#allocation3 + $0x588] sm:$0xff]
    %v1161 = vld [vmem:[#allocation3 + $0x590] sm:$0xff]
    %v1162 = vld [vmem:[#allocation3 + $0x598] sm:$0xff]
    %v1163 = vld [vmem:[#allocation3 + $0x5a0] sm:$0xff]
    %v1164 = vld [vmem:[#allocation3 + $0x5a8] sm:$0xff]
    %v1165 = vld [vmem:[#allocation3 + $0x5b0] sm:$0xff]
    %v1166 = vld [vmem:[#allocation3 + $0x5b8] sm:$0xff]
    %v1167 = vld [vmem:[#allocation3 + $0x5c0] sm:$0xff]
    %v1168 = vld [vmem:[#allocation3 + $0x5c8] sm:$0xff]
    %v1169 = vld [vmem:[#allocation3 + $0x5d0] sm:$0xff]
    %v1170 = vld [vmem:[#allocation3 + $0x5d8] sm:$0xff]
    %v1171 = vld [vmem:[#allocation3 + $0x5e0] sm:$0xff]
    %v1172 = vld [vmem:[#allocation3 + $0x5e8] sm:$0xff]
    %v1173 = vld [vmem:[#allocation3 + $0x5f0] sm:$0xff]
    %v1174 = vld [vmem:[#allocation3 + $0x5f8] sm:$0xff]
    %v1175 = vld [vmem:[#allocation3 + $0x600] sm:$0xff]
    %v1176 = vld [vmem:[#allocation3 + $0x608] sm:$0xff]
    %v1177 = vld [vmem:[#allocation3 + $0x610] sm:$0xff]
    %v1178 = vld [vmem:[#allocation3 + $0x618] sm:$0xff]
    %v1179 = vld [vmem:[#allocation3 + $0x620] sm:$0xff]
    %v1180 = vld [vmem:[#allocation3 + $0x628] sm:$0xff]
    %v1181 = vld [vmem:[#allocation3 + $0x630] sm:$0xff]
    %v1182 = vld [vmem:[#allocation3 + $0x638] sm:$0xff]
    %v1183 = vld [vmem:[#allocation3 + $0x640] sm:$0xff]
    %v1184 = vld [vmem:[#allocation3 + $0x648] sm:$0xff]
    %v1185 = vld [vmem:[#allocation3 + $0x650] sm:$0xff]
    %v1186 = vld [vmem:[#allocation3 + $0x658] sm:$0xff]
    %v1187 = vld [vmem:[#allocation3 + $0x660] sm:$0xff]
    %v1188 = vld [vmem:[#allocation3 + $0x668] sm:$0xff]
    %v1189 = vld [vmem:[#allocation3 + $0x670] sm:$0xff]
    %v1190 = vld [vmem:[#allocation3 + $0x678] sm:$0xff]
    %v1191 = vld [vmem:[#allocation3 + $0x680] sm:$0xff]
    %v1192 = vld [vmem:[#allocation3 + $0x688] sm:$0xff]
    %v1193 = vld [vmem:[#allocation3 + $0x690] sm:$0xff]
    %v1194 = vld [vmem:[#allocation3 + $0x698] sm:$0xff]
    %v1195 = vld [vmem:[#allocation3 + $0x6a0] sm:$0xff]
    %v1196 = vld [vmem:[#allocation3 + $0x6a8] sm:$0xff]
    %v1197 = vld [vmem:[#allocation3 + $0x6b0] sm:$0xff]
    %v1198 = vld [vmem:[#allocation3 + $0x6b8] sm:$0xff]
    %v1199 = vld [vmem:[#allocation3 + $0x6c0] sm:$0xff]
    %v1200 = vld [vmem:[#allocation3 + $0x6c8] sm:$0xff]
    %v1201 = vld [vmem:[#allocation3 + $0x6d0] sm:$0xff]
    %v1202 = vld [vmem:[#allocation3 + $0x6d8] sm:$0xff]
    %v1203 = vld [vmem:[#allocation3 + $0x6e0] sm:$0xff]
    %v1204 = vld [vmem:[#allocation3 + $0x6e8] sm:$0xff]
    %v1205 = vld [vmem:[#allocation3 + $0x6f0] sm:$0xff]
    %v1206 = vld [vmem:[#allocation3 + $0x6f8] sm:$0xff]
    %v1207 = vld [vmem:[#allocation3 + $0x700] sm:$0xff]
    %v1208 = vld [vmem:[#allocation3 + $0x708] sm:$0xff]
    %v1209 = vld [vmem:[#allocation3 + $0x710] sm:$0xff]
    %v1210 = vld [vmem:[#allocation3 + $0x718] sm:$0xff]
    %v1211 = vld [vmem:[#allocation3 + $0x720] sm:$0xff]
    %v1212 = vld [vmem:[#allocation3 + $0x728] sm:$0xff]
    %v1213 = vld [vmem:[#allocation3 + $0x730] sm:$0xff]
    %v1214 = vld [vmem:[#allocation3 + $0x738] sm:$0xff]
    %v1215 = vld [vmem:[#allocation3 + $0x740] sm:$0xff]
    %v1216 = vld [vmem:[#allocation3 + $0x748] sm:$0xff]
    %v1217 = vld [vmem:[#allocation3 + $0x750] sm:$0xff]
    %v1218 = vld [vmem:[#allocation3 + $0x758] sm:$0xff]
    %v1219 = vld [vmem:[#allocation3 + $0x760] sm:$0xff]
    %v1220 = vld [vmem:[#allocation3 + $0x768] sm:$0xff]
    %v1221 = vld [vmem:[#allocation3 + $0x770] sm:$0xff]
    %v1222 = vld [vmem:[#allocation3 + $0x778] sm:$0xff]
    %v1223 = vld [vmem:[#allocation3 + $0x780] sm:$0xff]
    %v1224 = vld [vmem:[#allocation3 + $0x788] sm:$0xff]
    %v1225 = vld [vmem:[#allocation3 + $0x790] sm:$0xff]
    %v1226 = vld [vmem:[#allocation3 + $0x798] sm:$0xff]
    %v1227 = vld [vmem:[#allocation3 + $0x7a0] sm:$0xff]
    %v1228 = vld [vmem:[#allocation3 + $0x7a8] sm:$0xff]
    %v1229 = vld [vmem:[#allocation3 + $0x7b0] sm:$0xff]
    %v1230 = vld [vmem:[#allocation3 + $0x7b8] sm:$0xff]
    %v1231 = vld [vmem:[#allocation3 + $0x7c0] sm:$0xff]
    %v1232 = vld [vmem:[#allocation3 + $0x7c8] sm:$0xff]
    %v1233 = vld [vmem:[#allocation3 + $0x7d0] sm:$0xff]
    %v1234 = vld [vmem:[#allocation3 + $0x7d8] sm:$0xff]
    %v1235 = vld [vmem:[#allocation3 + $0x7e0] sm:$0xff]
    %v1236 = vld [vmem:[#allocation3 + $0x7e8] sm:$0xff]
    %v1237 = vld [vmem:[#allocation3 + $0x7f0] sm:$0xff]
    %v1238 = vld [vmem:[#allocation3 + $0x7f8] sm:$0xff]
    %v1239 = vld [vmem:[#allocation3 + $0x800] sm:$0xff]
    %v1240 = vld [vmem:[#allocation3 + $0x808] sm:$0xff]
    %v1241 = vld [vmem:[#allocation3 + $0x810] sm:$0xff]
    %v1242 = vld [vmem:[#allocation3 + $0x818] sm:$0xff]
    %v1243 = vld [vmem:[#allocation3 + $0x820] sm:$0xff]
    %v1244 = vld [vmem:[#allocation3 + $0x828] sm:$0xff]
    %v1245 = vld [vmem:[#allocation3 + $0x830] sm:$0xff]
    %v1246 = vld [vmem:[#allocation3 + $0x838] sm:$0xff]
    %v1247 = vld [vmem:[#allocation3 + $0x840] sm:$0xff]
    %v1248 = vld [vmem:[#allocation3 + $0x848] sm:$0xff]
    %v1249 = vld [vmem:[#allocation3 + $0x850] sm:$0xff]
    %v1250 = vld [vmem:[#allocation3 + $0x858] sm:$0xff]
    %v1251 = vld [vmem:[#allocation3 + $0x860] sm:$0xff]
    %v1252 = vld [vmem:[#allocation3 + $0x868] sm:$0xff]
    %v1253 = vld [vmem:[#allocation3 + $0x870] sm:$0xff]
    %v1254 = vld [vmem:[#allocation3 + $0x878] sm:$0xff]
    %v1255 = vld [vmem:[#allocation3 + $0x880] sm:$0xff]
    %v1256 = vld [vmem:[#allocation3 + $0x888] sm:$0xff]
    %v1257 = vld [vmem:[#allocation3 + $0x890] sm:$0xff]
    %v1258 = vld [vmem:[#allocation3 + $0x898] sm:$0xff]
    %v1259 = vld [vmem:[#allocation3 + $0x8a0] sm:$0xff]
    %v1260 = vld [vmem:[#allocation3 + $0x8a8] sm:$0xff]
    %v1261 = vld [vmem:[#allocation3 + $0x8b0] sm:$0xff]
    %v1262 = vld [vmem:[#allocation3 + $0x8b8] sm:$0xff]
    %v1263 = vld [vmem:[#allocation3 + $0x8c0] sm:$0xff]
    %v1264 = vld [vmem:[#allocation3 + $0x8c8] sm:$0xff]
    %v1265 = vld [vmem:[#allocation3 + $0x8d0] sm:$0xff]
    %v1266 = vld [vmem:[#allocation3 + $0x8d8] sm:$0xff]
    %v1267 = vld [vmem:[#allocation3 + $0x8e0] sm:$0xff]
    %v1268 = vld [vmem:[#allocation3 + $0x8e8] sm:$0xff]
    %v1269 = vld [vmem:[#allocation3 + $0x8f0] sm:$0xff]
    %v1270 = vld [vmem:[#allocation3 + $0x8f8] sm:$0xff]
    %1271 = vmatprep.subr.bf16.mxu0 %v984
    %1272 = vmatpush1.bf16.msra.mxu0 %v983
    %1273 = vmatprep.subr.bf16.mxu0 %v986
    %1274 = vmatpush1.bf16.msra.mxu0 %v985
    %1275 = vmatprep.subr.bf16.mxu0 %v988
    %1276 = vmatpush1.bf16.msra.mxu0 %v987
    %1277 = vmatprep.subr.bf16.mxu0 %v990
    %1278 = vmatpush1.bf16.msra.mxu0 %v989
    %1279 = vmatprep.subr.bf16.mxu0 %v992
    %1280 = vmatpush1.bf16.msra.mxu0 %v991
    %1281 = vmatprep.subr.bf16.mxu0 %v994
    %1282 = vmatpush1.bf16.msra.mxu0 %v993
    %1283 = vmatprep.subr.bf16.mxu0 %v996
    %1284 = vmatpush1.bf16.msra.mxu0 %v995
    %1285 = vmatprep.subr.bf16.mxu0 %v998
    %1286 = vmatpush1.bf16.msra.mxu0 %v997
    %1287 = vmatprep.subr.bf16.mxu0 %v1000
    %1288 = vmatpush1.bf16.msra.mxu0 %v999
    %1289 = vmatprep.subr.bf16.mxu0 %v1002
    %1290 = vmatpush1.bf16.msra.mxu0 %v1001
    %1291 = vmatprep.subr.bf16.mxu0 %v1004
    %1292 = vmatpush1.bf16.msra.mxu0 %v1003
    %1293 = vmatprep.subr.bf16.mxu0 %v1006
    %1294 = vmatpush1.bf16.msra.mxu0 %v1005
    %1295 = vmatprep.subr.bf16.mxu0 %v1008
    %1296 = vmatpush1.bf16.msra.mxu0 %v1007
    %1297 = vmatprep.subr.bf16.mxu0 %v1010
    %1298 = vmatpush1.bf16.msra.mxu0 %v1009
    %1299 = vmatprep.subr.bf16.mxu0 %v1012
    %1300 = vmatpush1.bf16.msra.mxu0 %v1011
    %1301 = vmatprep.subr.bf16.mxu0 %v1014
    %1302 = vmatpush1.bf16.msra.mxu0 %v1013
    %1303 = vmatprep.mubr.bf16.mxu0 %v962
    %1304 = vmatmul.mubr.bf16.gmra.mrb[0].mxu0 %v961
    %v1305 = vpop.f32.mrb[0].mxu0
    %v1306 = vadd.f32 0.0, %v1305
    %v1307 = vpop.f32.mrb[0].mxu0
    %v1308 = vadd.f32 0.0, %v1307
    %v1309 = vpop.f32.mrb[0].mxu0
    %v1310 = vpop.f32.mrb[0].mxu0
    %1311 = vdwg.mxu0
    %1312 = vmatprep.subr.bf16.mxu0 %v1016
    %1313 = vmatpush1.bf16.msra.mxu0 %v1015
    %1314 = vmatprep.subr.bf16.mxu0 %v1018
    %1315 = vmatpush1.bf16.msra.mxu0 %v1017
    %1316 = vmatprep.subr.bf16.mxu0 %v1020
    %1317 = vmatpush1.bf16.msra.mxu0 %v1019
    %1318 = vmatprep.subr.bf16.mxu0 %v1022
    %1319 = vmatpush1.bf16.msra.mxu0 %v1021
    %1320 = vmatprep.subr.bf16.mxu0 %v1024
    %1321 = vmatpush1.bf16.msra.mxu0 %v1023
    %1322 = vmatprep.subr.bf16.mxu0 %v1026
    %1323 = vmatpush1.bf16.msra.mxu0 %v1025
    %1324 = vmatprep.subr.bf16.mxu0 %v1028
    %1325 = vmatpush1.bf16.msra.mxu0 %v1027
    %1326 = vmatprep.subr.bf16.mxu0 %v1030
    %1327 = vmatpush1.bf16.msra.mxu0 %v1029
    %1328 = vmatprep.subr.bf16.mxu0 %v1032
    %1329 = vmatpush1.bf16.msra.mxu0 %v1031
    %1330 = vmatprep.subr.bf16.mxu0 %v1034
    %1331 = vmatpush1.bf16.msra.mxu0 %v1033
    %1332 = vmatprep.subr.bf16.mxu0 %v1036
    %1333 = vmatpush1.bf16.msra.mxu0 %v1035
    %1334 = vmatprep.subr.bf16.mxu0 %v1038
    %1335 = vmatpush1.bf16.msra.mxu0 %v1037
    %1336 = vmatprep.subr.bf16.mxu0 %v1040
    %1337 = vmatpush1.bf16.msra.mxu0 %v1039
    %1338 = vmatprep.subr.bf16.mxu0 %v1042
    %1339 = vmatpush1.bf16.msra.mxu0 %v1041
    %1340 = vmatprep.subr.bf16.mxu0 %v1044
    %1341 = vmatpush1.bf16.msra.mxu0 %v1043
    %1342 = vmatprep.subr.bf16.mxu0 %v1046
    %1343 = vmatpush1.bf16.msra.mxu0 %v1045
    %1344 = vmatprep.mubr.bf16.mxu0 %v964
    %1345 = vmatmul.mubr.bf16.gmra.mrb[0].mxu0 %v963
    %v1346 = vpop.f32.mrb[0].mxu0
    %v1347 = vadd.f32 %v1306, %v1346
    %v1348 = vpop.f32.mrb[0].mxu0
    %v1349 = vadd.f32 %v1308, %v1348
    %v1350 = vpop.f32.mrb[0].mxu0
    %v1351 = vpop.f32.mrb[0].mxu0
    %1352 = vdwg.mxu0
    %1353 = vmatprep.subr.bf16.mxu0 %v1048
    %1354 = vmatpush1.bf16.msra.mxu0 %v1047
    %1355 = vmatprep.subr.bf16.mxu0 %v1050
    %1356 = vmatpush1.bf16.msra.mxu0 %v1049
    %1357 = vmatprep.subr.bf16.mxu0 %v1052
    %1358 = vmatpush1.bf16.msra.mxu0 %v1051
    %1359 = vmatprep.subr.bf16.mxu0 %v1054
    %1360 = vmatpush1.bf16.msra.mxu0 %v1053
    %1361 = vmatprep.subr.bf16.mxu0 %v1056
    %1362 = vmatpush1.bf16.msra.mxu0 %v1055
    %1363 = vmatprep.subr.bf16.mxu0 %v1058
    %1364 = vmatpush1.bf16.msra.mxu0 %v1057
    %1365 = vmatprep.subr.bf16.mxu0 %v1060
    %1366 = vmatpush1.bf16.msra.mxu0 %v1059
    %1367 = vmatprep.subr.bf16.mxu0 %v1062
    %1368 = vmatpush1.bf16.msra.mxu0 %v1061
    %1369 = vmatprep.subr.bf16.mxu0 %v1064
    %1370 = vmatpush1.bf16.msra.mxu0 %v1063
    %1371 = vmatprep.subr.bf16.mxu0 %v1066
    %1372 = vmatpush1.bf16.msra.mxu0 %v1065
    %1373 = vmatprep.subr.bf16.mxu0 %v1068
    %1374 = vmatpush1.bf16.msra.mxu0 %v1067
    %1375 = vmatprep.subr.bf16.mxu0 %v1070
    %1376 = vmatpush1.bf16.msra.mxu0 %v1069
    %1377 = vmatprep.subr.bf16.mxu0 %v1072
    %1378 = vmatpush1.bf16.msra.mxu0 %v1071
    %1379 = vmatprep.subr.bf16.mxu0 %v1074
    %1380 = vmatpush1.bf16.msra.mxu0 %v1073
    %1381 = vmatprep.subr.bf16.mxu0 %v1076
    %1382 = vmatpush1.bf16.msra.mxu0 %v1075
    %1383 = vmatprep.subr.bf16.mxu0 %v1078
    %1384 = vmatpush1.bf16.msra.mxu0 %v1077
    %1385 = vmatprep.mubr.bf16.mxu0 %v966
    %1386 = vmatmul.mubr.bf16.gmra.mrb[0].mxu0 %v965
    %v1387 = vpop.f32.mrb[0].mxu0
    %v1388 = vadd.f32 %v1347, %v1387
    %v1389 = vpop.f32.mrb[0].mxu0
    %v1390 = vadd.f32 %v1349, %v1389
    %v1391 = vpop.f32.mrb[0].mxu0
    %v1392 = vpop.f32.mrb[0].mxu0
    %1393 = vdwg.mxu0
    %1394 = vmatprep.subr.bf16.mxu0 %v1080
    %1395 = vmatpush1.bf16.msra.mxu0 %v1079
    %1396 = vmatprep.subr.bf16.mxu0 %v1082
    %1397 = vmatpush1.bf16.msra.mxu0 %v1081
    %1398 = vmatprep.subr.bf16.mxu0 %v1084
    %1399 = vmatpush1.bf16.msra.mxu0 %v1083
    %1400 = vmatprep.subr.bf16.mxu0 %v1086
    %1401 = vmatpush1.bf16.msra.mxu0 %v1085
    %1402 = vmatprep.subr.bf16.mxu0 %v1088
    %1403 = vmatpush1.bf16.msra.mxu0 %v1087
    %1404 = vmatprep.subr.bf16.mxu0 %v1090
    %1405 = vmatpush1.bf16.msra.mxu0 %v1089
    %1406 = vmatprep.subr.bf16.mxu0 %v1092
    %1407 = vmatpush1.bf16.msra.mxu0 %v1091
    %1408 = vmatprep.subr.bf16.mxu0 %v1094
    %1409 = vmatpush1.bf16.msra.mxu0 %v1093
    %1410 = vmatprep.subr.bf16.mxu0 %v1096
    %1411 = vmatpush1.bf16.msra.mxu0 %v1095
    %1412 = vmatprep.subr.bf16.mxu0 %v1098
    %1413 = vmatpush1.bf16.msra.mxu0 %v1097
    %1414 = vmatprep.subr.bf16.mxu0 %v1100
    %1415 = vmatpush1.bf16.msra.mxu0 %v1099
    %1416 = vmatprep.subr.bf16.mxu0 %v1102
    %1417 = vmatpush1.bf16.msra.mxu0 %v1101
    %1418 = vmatprep.subr.bf16.mxu0 %v1104
    %1419 = vmatpush1.bf16.msra.mxu0 %v1103
    %1420 = vmatprep.subr.bf16.mxu0 %v1106
    %1421 = vmatpush1.bf16.msra.mxu0 %v1105
    %1422 = vmatprep.subr.bf16.mxu0 %v1108
    %1423 = vmatpush1.bf16.msra.mxu0 %v1107
    %1424 = vmatprep.subr.bf16.mxu0 %v1110
    %1425 = vmatpush1.bf16.msra.mxu0 %v1109
    %1426 = vmatprep.mubr.bf16.mxu0 %v968
    %1427 = vmatmul.mubr.bf16.gmra.mrb[0].mxu0 %v967
    %v1428 = vpop.f32.mrb[0].mxu0
    %v1429 = vadd.f32 %v1388, %v1428
    %v1430 = vpop.f32.mrb[0].mxu0
    %v1431 = vadd.f32 %v1390, %v1430
    %v1432 = vpop.f32.mrb[0].mxu0
    %v1433 = vpop.f32.mrb[0].mxu0
    %1434 = vdwg.mxu0
    %1435 = vmatprep.subr.bf16.mxu0 %v1112
    %1436 = vmatpush1.bf16.msra.mxu0 %v1111
    %1437 = vmatprep.subr.bf16.mxu0 %v1114
    %1438 = vmatpush1.bf16.msra.mxu0 %v1113
    %1439 = vmatprep.subr.bf16.mxu0 %v1116
    %1440 = vmatpush1.bf16.msra.mxu0 %v1115
    %1441 = vmatprep.subr.bf16.mxu0 %v1118
    %1442 = vmatpush1.bf16.msra.mxu0 %v1117
    %1443 = vmatprep.subr.bf16.mxu0 %v1120
    %1444 = vmatpush1.bf16.msra.mxu0 %v1119
    %1445 = vmatprep.subr.bf16.mxu0 %v1122
    %1446 = vmatpush1.bf16.msra.mxu0 %v1121
    %1447 = vmatprep.subr.bf16.mxu0 %v1124
    %1448 = vmatpush1.bf16.msra.mxu0 %v1123
    %1449 = vmatprep.subr.bf16.mxu0 %v1126
    %1450 = vmatpush1.bf16.msra.mxu0 %v1125
    %1451 = vmatprep.subr.bf16.mxu0 %v1128
    %1452 = vmatpush1.bf16.msra.mxu0 %v1127
    %1453 = vmatprep.subr.bf16.mxu0 %v1130
    %1454 = vmatpush1.bf16.msra.mxu0 %v1129
    %1455 = vmatprep.subr.bf16.mxu0 %v1132
    %1456 = vmatpush1.bf16.msra.mxu0 %v1131
    %1457 = vmatprep.subr.bf16.mxu0 %v1134
    %1458 = vmatpush1.bf16.msra.mxu0 %v1133
    %1459 = vmatprep.subr.bf16.mxu0 %v1136
    %1460 = vmatpush1.bf16.msra.mxu0 %v1135
    %1461 = vmatprep.subr.bf16.mxu0 %v1138
    %1462 = vmatpush1.bf16.msra.mxu0 %v1137
    %1463 = vmatprep.subr.bf16.mxu0 %v1140
    %1464 = vmatpush1.bf16.msra.mxu0 %v1139
    %1465 = vmatprep.subr.bf16.mxu0 %v1142
    %1466 = vmatpush1.bf16.msra.mxu0 %v1141
    %1467 = vmatprep.mubr.bf16.mxu0 %v970
    %1468 = vmatmul.mubr.bf16.gmra.mrb[0].mxu0 %v969
    %v1469 = vpop.f32.mrb[0].mxu0
    %v1470 = vadd.f32 %v1429, %v1469
    %v1471 = vpop.f32.mrb[0].mxu0
    %v1472 = vadd.f32 %v1431, %v1471
    %v1473 = vpop.f32.mrb[0].mxu0
    %v1474 = vpop.f32.mrb[0].mxu0
    %1475 = vdwg.mxu0
    %1476 = vmatprep.subr.bf16.mxu0 %v1144
    %1477 = vmatpush1.bf16.msra.mxu0 %v1143
    %1478 = vmatprep.subr.bf16.mxu0 %v1146
    %1479 = vmatpush1.bf16.msra.mxu0 %v1145
    %1480 = vmatprep.subr.bf16.mxu0 %v1148
    %1481 = vmatpush1.bf16.msra.mxu0 %v1147
    %1482 = vmatprep.subr.bf16.mxu0 %v1150
    %1483 = vmatpush1.bf16.msra.mxu0 %v1149
    %1484 = vmatprep.subr.bf16.mxu0 %v1152
    %1485 = vmatpush1.bf16.msra.mxu0 %v1151
    %1486 = vmatprep.subr.bf16.mxu0 %v1154
    %1487 = vmatpush1.bf16.msra.mxu0 %v1153
    %1488 = vmatprep.subr.bf16.mxu0 %v1156
    %1489 = vmatpush1.bf16.msra.mxu0 %v1155
    %1490 = vmatprep.subr.bf16.mxu0 %v1158
    %1491 = vmatpush1.bf16.msra.mxu0 %v1157
    %1492 = vmatprep.subr.bf16.mxu0 %v1160
    %1493 = vmatpush1.bf16.msra.mxu0 %v1159
    %1494 = vmatprep.subr.bf16.mxu0 %v1162
    %1495 = vmatpush1.bf16.msra.mxu0 %v1161
    %1496 = vmatprep.subr.bf16.mxu0 %v1164
    %1497 = vmatpush1.bf16.msra.mxu0 %v1163
    %1498 = vmatprep.subr.bf16.mxu0 %v1166
    %1499 = vmatpush1.bf16.msra.mxu0 %v1165
    %1500 = vmatprep.subr.bf16.mxu0 %v1168
    %1501 = vmatpush1.bf16.msra.mxu0 %v1167
    %1502 = vmatprep.subr.bf16.mxu0 %v1170
    %1503 = vmatpush1.bf16.msra.mxu0 %v1169
    %1504 = vmatprep.subr.bf16.mxu0 %v1172
    %1505 = vmatpush1.bf16.msra.mxu0 %v1171
    %1506 = vmatprep.subr.bf16.mxu0 %v1174
    %1507 = vmatpush1.bf16.msra.mxu0 %v1173
    %1508 = vmatprep.mubr.bf16.mxu0 %v972
    %1509 = vmatmul.mubr.bf16.gmra.mrb[0].mxu0 %v971
    %v1510 = vpop.f32.mrb[0].mxu0
    %v1511 = vadd.f32 %v1470, %v1510
    %v1512 = vpop.f32.mrb[0].mxu0
    %v1513 = vadd.f32 %v1472, %v1512
    %v1514 = vpop.f32.mrb[0].mxu0
    %v1515 = vpop.f32.mrb[0].mxu0
    %1516 = vdwg.mxu0
    %1517 = vmatprep.subr.bf16.mxu0 %v1176
    %1518 = vmatpush1.bf16.msra.mxu0 %v1175
    %1519 = vmatprep.subr.bf16.mxu0 %v1178
    %1520 = vmatpush1.bf16.msra.mxu0 %v1177
    %1521 = vmatprep.subr.bf16.mxu0 %v1180
    %1522 = vmatpush1.bf16.msra.mxu0 %v1179
    %1523 = vmatprep.subr.bf16.mxu0 %v1182
    %1524 = vmatpush1.bf16.msra.mxu0 %v1181
    %1525 = vmatprep.subr.bf16.mxu0 %v1184
    %1526 = vmatpush1.bf16.msra.mxu0 %v1183
    %1527 = vmatprep.subr.bf16.mxu0 %v1186
    %1528 = vmatpush1.bf16.msra.mxu0 %v1185
    %1529 = vmatprep.subr.bf16.mxu0 %v1188
    %1530 = vmatpush1.bf16.msra.mxu0 %v1187
    %1531 = vmatprep.subr.bf16.mxu0 %v1190
    %1532 = vmatpush1.bf16.msra.mxu0 %v1189
    %1533 = vmatprep.subr.bf16.mxu0 %v1192
    %1534 = vmatpush1.bf16.msra.mxu0 %v1191
    %1535 = vmatprep.subr.bf16.mxu0 %v1194
    %1536 = vmatpush1.bf16.msra.mxu0 %v1193
    %1537 = vmatprep.subr.bf16.mxu0 %v1196
    %1538 = vmatpush1.bf16.msra.mxu0 %v1195
    %1539 = vmatprep.subr.bf16.mxu0 %v1198
    %1540 = vmatpush1.bf16.msra.mxu0 %v1197
    %1541 = vmatprep.subr.bf16.mxu0 %v1200
    %1542 = vmatpush1.bf16.msra.mxu0 %v1199
    %1543 = vmatprep.subr.bf16.mxu0 %v1202
    %1544 = vmatpush1.bf16.msra.mxu0 %v1201
    %1545 = vmatprep.subr.bf16.mxu0 %v1204
    %1546 = vmatpush1.bf16.msra.mxu0 %v1203
    %1547 = vmatprep.subr.bf16.mxu0 %v1206
    %1548 = vmatpush1.bf16.msra.mxu0 %v1205
    %1549 = vmatprep.mubr.bf16.mxu0 %v974
    %1550 = vmatmul.mubr.bf16.gmra.mrb[0].mxu0 %v973
    %v1551 = vpop.f32.mrb[0].mxu0
    %v1552 = vadd.f32 %v1511, %v1551
    %v1553 = vpop.f32.mrb[0].mxu0
    %v1554 = vadd.f32 %v1513, %v1553
    %v1555 = vpop.f32.mrb[0].mxu0
    %v1556 = vpop.f32.mrb[0].mxu0
    %1557 = vdwg.mxu0
    %1558 = vmatprep.subr.bf16.mxu0 %v1208
    %1559 = vmatpush1.bf16.msra.mxu0 %v1207
    %1560 = vmatprep.subr.bf16.mxu0 %v1210
    %1561 = vmatpush1.bf16.msra.mxu0 %v1209
    %1562 = vmatprep.subr.bf16.mxu0 %v1212
    %1563 = vmatpush1.bf16.msra.mxu0 %v1211
    %1564 = vmatprep.subr.bf16.mxu0 %v1214
    %1565 = vmatpush1.bf16.msra.mxu0 %v1213
    %1566 = vmatprep.subr.bf16.mxu0 %v1216
    %1567 = vmatpush1.bf16.msra.mxu0 %v1215
    %1568 = vmatprep.subr.bf16.mxu0 %v1218
    %1569 = vmatpush1.bf16.msra.mxu0 %v1217
    %1570 = vmatprep.subr.bf16.mxu0 %v1220
    %1571 = vmatpush1.bf16.msra.mxu0 %v1219
    %1572 = vmatprep.subr.bf16.mxu0 %v1222
    %1573 = vmatpush1.bf16.msra.mxu0 %v1221
    %1574 = vmatprep.subr.bf16.mxu0 %v1224
    %1575 = vmatpush1.bf16.msra.mxu0 %v1223
    %1576 = vmatprep.subr.bf16.mxu0 %v1226
    %1577 = vmatpush1.bf16.msra.mxu0 %v1225
    %1578 = vmatprep.subr.bf16.mxu0 %v1228
    %1579 = vmatpush1.bf16.msra.mxu0 %v1227
    %1580 = vmatprep.subr.bf16.mxu0 %v1230
    %1581 = vmatpush1.bf16.msra.mxu0 %v1229
    %1582 = vmatprep.subr.bf16.mxu0 %v1232
    %1583 = vmatpush1.bf16.msra.mxu0 %v1231
    %1584 = vmatprep.subr.bf16.mxu0 %v1234
    %1585 = vmatpush1.bf16.msra.mxu0 %v1233
    %1586 = vmatprep.subr.bf16.mxu0 %v1236
    %1587 = vmatpush1.bf16.msra.mxu0 %v1235
    %1588 = vmatprep.subr.bf16.mxu0 %v1238
    %1589 = vmatpush1.bf16.msra.mxu0 %v1237
    %1590 = vmatprep.mubr.bf16.mxu0 %v976
    %1591 = vmatmul.mubr.bf16.gmra.mrb[0].mxu0 %v975
    %v1592 = vpop.f32.mrb[0].mxu0
    %v1593 = vadd.f32 %v1552, %v1592
    %v1594 = vpop.f32.mrb[0].mxu0
    %v1595 = vadd.f32 %v1554, %v1594
    %v1596 = vpop.f32.mrb[0].mxu0
    %v1597 = vpop.f32.mrb[0].mxu0
    %1598 = vdwg.mxu0
    %1599 = vmatprep.subr.bf16.mxu0 %v1240
    %1600 = vmatpush1.bf16.msra.mxu0 %v1239
    %1601 = vmatprep.subr.bf16.mxu0 %v1242
    %1602 = vmatpush1.bf16.msra.mxu0 %v1241
    %1603 = vmatprep.subr.bf16.mxu0 %v1244
    %1604 = vmatpush1.bf16.msra.mxu0 %v1243
    %1605 = vmatprep.subr.bf16.mxu0 %v1246
    %1606 = vmatpush1.bf16.msra.mxu0 %v1245
    %1607 = vmatprep.subr.bf16.mxu0 %v1248
    %1608 = vmatpush1.bf16.msra.mxu0 %v1247
    %1609 = vmatprep.subr.bf16.mxu0 %v1250
    %1610 = vmatpush1.bf16.msra.mxu0 %v1249
    %1611 = vmatprep.subr.bf16.mxu0 %v1252
    %1612 = vmatpush1.bf16.msra.mxu0 %v1251
    %1613 = vmatprep.subr.bf16.mxu0 %v1254
    %1614 = vmatpush1.bf16.msra.mxu0 %v1253
    %1615 = vmatprep.subr.bf16.mxu0 %v1256
    %1616 = vmatpush1.bf16.msra.mxu0 %v1255
    %1617 = vmatprep.subr.bf16.mxu0 %v1258
    %1618 = vmatpush1.bf16.msra.mxu0 %v1257
    %1619 = vmatprep.subr.bf16.mxu0 %v1260
    %1620 = vmatpush1.bf16.msra.mxu0 %v1259
    %1621 = vmatprep.subr.bf16.mxu0 %v1262
    %1622 = vmatpush1.bf16.msra.mxu0 %v1261
    %1623 = vmatprep.subr.bf16.mxu0 %v1264
    %1624 = vmatpush1.bf16.msra.mxu0 %v1263
    %1625 = vmatprep.subr.bf16.mxu0 %v1266
    %1626 = vmatpush1.bf16.msra.mxu0 %v1265
    %1627 = vmatprep.subr.bf16.mxu0 %v1268
    %1628 = vmatpush1.bf16.msra.mxu0 %v1267
    %1629 = vmatprep.subr.bf16.mxu0 %v1270
    %1630 = vmatpush1.bf16.msra.mxu0 %v1269
    %1631 = vmatprep.mubr.bf16.mxu0 %v978
    %1632 = vmatmul.mubr.bf16.gmra.mrb[0].mxu0 %v977
    %v1633 = vpop.f32.mrb[0].mxu0
    %v1634 = vadd.f32 %v1593, %v1633
    %v1635 = vpop.f32.mrb[0].mxu0
    %v1636 = vadd.f32 %v1595, %v1635
    %v1637 = vpop.f32.mrb[0].mxu0
    %v1638 = vpop.f32.mrb[0].mxu0
    %1639 = vdwg.mxu0
    %v1640 = vld [vmem:[#allocation16] sm:$0x3]
    %v1641 = vld [vmem:[#allocation18] sm:$0x3]
    %v1642 = vrot.slane %v1634, 4
    %v1643 = vadd.f32 %v1634, %v1642
    %v1644 = vrot.slane %v1643, 2
    %v1645 = vadd.f32 %v1643, %v1644
    %v1646 = vrot.slane %v1645, 1
    %v1647 = vadd.f32 %v1645, %v1646
    %v1648 = vrot.slane %v1636, 4
    %v1649 = vadd.f32 %v1636, %v1648
    %v1650 = vrot.slane %v1649, 2
    %v1651 = vadd.f32 %v1649, %v1650
    %v1652 = vrot.slane %v1651, 1
    %v1653 = vadd.f32 %v1651, %v1652
    %v1654 = vmul.f32 %v1647, %v321
    %v1655 = vmul.f32 %v1653, %v321
    %v1656 = vsub.f32 %v1634, %v1654
    %v1657 = vsub.f32 %v1636, %v1655
    %v1658 = vmul.f32 %v1656, %v1656
    %v1659 = vmul.f32 %v1657, %v1657
    %v1660 = vrot.slane %v1658, 4
    %v1661 = vadd.f32 %v1658, %v1660
    %v1662 = vrot.slane %v1661, 2
    %v1663 = vadd.f32 %v1661, %v1662
    %v1664 = vrot.slane %v1663, 1
    %v1665 = vadd.f32 %v1663, %v1664
    %v1666 = vrot.slane %v1659, 4
    %v1667 = vadd.f32 %v1659, %v1666
    %v1668 = vrot.slane %v1667, 2
    %v1669 = vadd.f32 %v1667, %v1668
    %v1670 = vrot.slane %v1669, 1
    %v1671 = vadd.f32 %v1669, %v1670
    %v1672 = vmul.f32 %v1665, %v321
    %v1673 = vmul.f32 %v1671, %v321
    %v1674 = vadd.f32 %v1672, 1e-05
    %v1675 = vadd.f32 %v1673, 1e-05
    %v1676 = vrsqrt.pop %v1674
    %v1677 = vrsqrt.pop %v1675
    %v1680 = vcombine.low %v1676, %v1677
    %v1682 = vunpack.c.l.s4 1966171168
    %v1683 = vunpack.c.0.s8 %v1682
    %v1684 = vlaneseq
    %v1685 = vshrl.u32 %v1684, 7
    %v1686 = vsub.s32 %v1683, %v1685
    %v1687 = vrot.slane %v1680, %v1686
    %v1689 = vunpack.c.l.s4 1966171168
    %v1690 = vunpack.c.0.s8 %v1689
    %v1691 = vlaneseq
    %v1692 = vshrl.u32 %v1691, 7
    %v1693 = vsub.s32 %v1690, %v1692
    %v1694 = vrot.slane %v1687, %v1693
    %v1696 = vmul.f32 %v1640, %v1694
    %v1698 = vlaneseq
    %v1699 = vshrl.u32 %v1698, 7
    %v1700 = vsub.s32 0, %v1699
    %v1701 = vrot.slane %v1696, %v1700
    %v1702 = vlaneseq
    %v1703 = vshrl.u32 %v1702, 7
    %v1704 = vsub.s32 1, %v1703
    %v1705 = vrot.slane %v1696, %v1704
    %v1708 = vmul.f32 %v1656, %v1701
    %v1709 = vmul.f32 %v1657, %v1705
    %v1711 = vlaneseq
    %v1712 = vshrl.u32 %v1711, 7
    %v1713 = vsub.s32 0, %v1712
    %v1714 = vrot.slane %v1641, %v1713
    %v1715 = vlaneseq
    %v1716 = vshrl.u32 %v1715, 7
    %v1717 = vsub.s32 1, %v1716
    %v1718 = vrot.slane %v1641, %v1717
    %v1721 = vadd.f32 %v1708, %v1714
    %v1722 = vadd.f32 %v1709, %v1718
    %vm1723 = vcmp.ge.f32.partialorder %v1721, 0.0
    %vm1724 = vcmp.ge.f32.partialorder %v1722, 0.0
    %v1725 = vmul.f32 %v1721, 0.2
    %v1726 = vmul.f32 %v1722, 0.2
    %v1727 = vsel %vm1723, %v1721, %v1725
    %v1728 = vsel %vm1724, %v1722, %v1726
    %v1729 = vld [vmem:[#allocation19] sm:$0xff]
    %v1730 = vld [vmem:[#allocation19 + $0x8] sm:$0xff]
    %v1731 = vmul.f32 %v1727, %v1729
    %v1732 = vmul.f32 %v1728, %v1730
    %v1733 = vlaneseq
    %v1734 = vand.u32 %v1733, 127
    %v1735 = vmul.u32 %v206, 4
    %vm1736 = vcmp.ge.s32.totalorder %v1734, %v1735
    %v1737 = vadd.s32 %v1735, 4
    %vm1738 = vcmp.lt.s32.totalorder %v1734, %v1737
    %vm1739 = vmand %vm1736, %vm1738
    %v1740 = vsel %vm1739, 1, 0
    %v1741 = vcvt.s32.f32 %v1740
    %vm1742 = vcmask 64512
    %v1744 = vsel %vm1742, %v1741, 0
    %1746 = vmatprep.subr.mxu0 %v1732
    %1747 = vmatpush1.msra.mxu0 %v1731
    %1748 = vmatprep.subr.mxu0 0.0
    %1749 = vmatpush1.msra.mxu0 0.0
    %1750 = vmatprep.subr.mxu0 0.0
    %1751 = vmatpush1.msra.mxu0 0.0
    %1752 = vmatprep.subr.mxu0 0.0
    %1753 = vmatpush1.msra.mxu0 0.0
    %1754 = vmatprep.subr.mxu0 0.0
    %1755 = vmatpush1.msra.mxu0 0.0
    %1756 = vmatprep.subr.mxu0 0.0
    %1757 = vmatpush1.msra.mxu0 0.0
    %1758 = vmatprep.subr.mxu0 0.0
    %1759 = vmatpush1.msra.mxu0 0.0
    %1760 = vmatprep.subr.mxu0 0.0
    %1761 = vmatpush1.msra.mxu0 0.0
    %1762 = vmatprep.subr.mxu0 0.0
    %1763 = vmatpush1.msra.mxu0 0.0
    %1764 = vmatprep.subr.mxu0 0.0
    %1765 = vmatpush1.msra.mxu0 0.0
    %1766 = vmatprep.subr.mxu0 0.0
    %1767 = vmatpush1.msra.mxu0 0.0
    %1768 = vmatprep.subr.mxu0 0.0
    %1769 = vmatpush1.msra.mxu0 0.0
    %1770 = vmatprep.subr.mxu0 0.0
    %1771 = vmatpush1.msra.mxu0 0.0
    %1772 = vmatprep.subr.mxu0 0.0
    %1773 = vmatpush1.msra.mxu0 0.0
    %1774 = vmatprep.subr.mxu0 0.0
    %1775 = vmatpush1.msra.mxu0 0.0
    %1776 = vmatprep.subr.mxu0 0.0
    %1777 = vmatpush1.msra.mxu0 0.0
    %1778 = vmatprep.subr.mxu0 0.0
    %1779 = vmatpush1.msra.mxu0 0.0
    %1780 = vmatprep.subr.mxu0 0.0
    %1781 = vmatpush1.msra.mxu0 0.0
    %1782 = vmatprep.subr.mxu0 0.0
    %1783 = vmatpush1.msra.mxu0 0.0
    %1784 = vmatprep.subr.mxu0 0.0
    %1785 = vmatpush1.msra.mxu0 0.0
    %1786 = vmatprep.subr.mxu0 0.0
    %1787 = vmatpush1.msra.mxu0 0.0
    %1788 = vmatprep.subr.mxu0 0.0
    %1789 = vmatpush1.msra.mxu0 0.0
    %1790 = vmatprep.subr.mxu0 0.0
    %1791 = vmatpush1.msra.mxu0 0.0
    %1792 = vmatprep.subr.mxu0 0.0
    %1793 = vmatpush1.msra.mxu0 0.0
    %1794 = vmatprep.subr.mxu0 0.0
    %1795 = vmatpush1.msra.mxu0 0.0
    %1796 = vmatprep.subr.mxu0 0.0
    %1797 = vmatpush1.msra.mxu0 0.0
    %1798 = vmatprep.subr.mxu0 0.0
    %1799 = vmatpush1.msra.mxu0 0.0
    %1800 = vmatprep.subr.mxu0 0.0
    %1801 = vmatpush1.msra.mxu0 0.0
    %1802 = vmatprep.subr.mxu0 0.0
    %1803 = vmatpush1.msra.mxu0 0.0
    %1804 = vmatprep.subr.mxu0 0.0
    %1805 = vmatpush1.msra.mxu0 0.0
    %1806 = vmatprep.subr.mxu0 0.0
    %1807 = vmatpush1.msra.mxu0 0.0
    %1808 = vmatprep.subr.mxu0 0.0
    %1809 = vmatpush1.msra.mxu0 0.0
    %1810 = vmatprep.mubr.f32.mxu0 0.0
    %1811 = vmatmul.mubr.f32.gmra.mrb[0].mxu0 %v1744
    %v1812 = vpop.f32.mrb[0].mxu0
    %v1813 = vadd.f32 0.0, %v1812
    %v1814 = vpop.f32.mrb[0].mxu0
    %v1815 = vadd.f32 0.0, %v1814
    %1816 = vdwg.mxu0
    %v1817 = vsel %vm870, %v1813, 0.0
    %v1818 = vsel %vm870, %v1815, 0.0
    %v1819 = vadd.f32 %v1817, %v1818
    %1820 = vadd.xlane.f32.xlu0 %v1819
    %v1821 = vpop.xlane.xlu0 %1820
    %v1822 = vld [vmem:[#allocation7] sm:$0x1]
    %v1824 = vlaneseq
    %v1825 = vshrl.u32 %v1824, 7
    %v1826 = vsub.s32 0, %v1825
    %v1827 = vrot.slane %v1822, %v1826
    %v1829 = vadd.f32 %v1821, %v1827
    %vm1830 = vcmask 1024
    %1831 = vst.msk [vmem:[%s12] sm:$0x3] %vm1830, %v1829
    // Predicated region
    $region74: #{descriptor4_forward.1} parent=1 // pred_check
      _
    $region75: #{descriptor4_forward.1} parent=1 // pred_check_branch
      %1833 = sbr.rel (0) target = $region77
    $region76: #{descriptor4_forward.1} parent=1 // pred_region
      _
    $region77: #{descriptor4_forward.1} parent=1 // pred_fallthru
      _
    // Predicated region
    $region78: #{descriptor4_forward.1} parent=1 // pred_check
      _
    $region79: #{descriptor4_forward.1} parent=1 // pred_check_branch
      %1835 = sbr.rel (0) target = $region81
    $region80: #{descriptor4_forward.1} parent=1 // pred_region
      _
    $region81: #{descriptor4_forward.1} parent=1 // pred_fallthru
      _
    %1836 = vsyncpa [#allocation9], 1
    %1837 = vsyncpa [#allocation11], 1
    %1838 = vsyncpa [#allocation14], 1
    %1839 = vsyncpa [#allocation17], 1
    %1840 = vsyncpa [#allocation20], 1
  %1841 = vsyncmov [#allocation6]
  %s1842 = vpop.sfrf %1841
  %p1843 = scmp.eq.s32.totalorder %s1842, 0
  %p1844 = pneg %p1843
  %1846 = shalt.err (%p1844)
  %s1847 = scalar_lea.sflag [#allocation6], 1
  %1848 = vsyncmov %s1847
  %s1849 = vpop.sfrf %1848
  %p1850 = scmp.eq.s32.totalorder %s1849, 0
  %p1851 = pneg %p1850
  %1853 = shalt.err (%p1851)

</llo_original>
